<compile_context>
chip_gen: v7x
topology: tpu7x:2x2x1
jax: 0.10.0
libtpu: 0.0.40
codegen_flags: <defaults>
</compile_context>

<pallas_src>
import math

import numpy as np
import jax
import jax.numpy as jnp
from jax.experimental import pallas as pl
from jax.experimental.pallas import tpu as pltpu


# ----------------------------- shared math helpers -----------------------------

def _mm(a, b):
    # Default MXU precision (single bf16 pass, f32 accumulation).
    return jnp.dot(a, b, preferred_element_type=jnp.float32)


def _mm_hi(a, b):
    # High precision: one-time host-side weight folding + pure-JAX reference only.
    return jnp.dot(a, b, preferred_element_type=jnp.float32,
                   precision=jax.lax.Precision.HIGHEST)


def _ln(x, gamma, beta, eps=1e-5):
    mu = jnp.mean(x, axis=-1, keepdims=True)
    xc = x - mu
    var = jnp.mean(xc * xc, axis=-1, keepdims=True)
    return xc * jax.lax.rsqrt(var + eps) * gamma + beta


# ----------------------------- Pallas kernel -----------------------------

def _make_edge_kernel(d, n_heads):
    dh = d // n_heads
    bf16 = jnp.bfloat16
    f32 = jnp.float32

    def edge_kernel(hs_ref, hd_ref, e_ref, hn_ref, w_ref, vec_ref,
                    e_out_ref, h_out_ref):
        hs = hs_ref[...]            # (TE, d) bf16  h[src]
        hd = hd_ref[...]            # (TE, d) bf16  h[dst]
        e0 = e_ref[...]             # (TE, d) bf16  edge features
        hn = hn_ref[...]            # (TE, d) bf16  residual base (E == N)

        # Static slices of the packed weight / bias stacks (zero-cost views).
        def mat(i, rows, cols):
            return w_ref[i * d:i * d + rows, :cols]

        def vec(i, cols=d):
            return vec_ref[i:i + 1, :cols]

        # --- q/k/v projections (MXU, bf16 operands, f32 accumulation) ---
        q = _mm(hd, mat(0, d, d)) + vec(0)
        k = _mm(hs, mat(1, d, d)) + vec(1)
        v = _mm(hs, mat(2, d, d)) + vec(2)

        # --- per-edge multi-head attention, softmax over the head axis ---
        # "Lane-broadcast" form: one block-diagonal (d, d) matmul (1/sqrt(dh)
        # folded in) yields each head's score replicated across its dh lanes,
        # so the head max/sum are plain lane-axis reductions and no separate
        # broadcast-back matmul is needed.
        qk = (q * k).astype(bf16)
        scores_b = _mm(qk, mat(11, d, d))                    # (TE, d)
        m = jnp.max(scores_b, axis=-1, keepdims=True)        # max over heads
        p = jnp.exp(scores_b - m)
        denom = jnp.sum(p, axis=-1, keepdims=True)           # = dh * sum_h p_h
        attn_b = p * (float(dh) * pl.reciprocal(denom, approx=True))
        # TODO(synk): attention / MLP dropouts are identity (eval mode).
        msg = attn_b * v          # un-projected message; o_proj folded into wn1_f

        # --- edge MLP: Linear(3d->d) + LN + GELU + Linear(d->d); residual + LN1 ---
        e_in = jnp.concatenate([hs, e0, hd], axis=-1)        # (TE, 3d) lane concat
        em = _mm(e_in, mat(3, 3 * d, d)) + vec(3)
        em = jax.nn.gelu(_ln(em, vec(4), vec(5)), approximate=True)
        e_out_ref[...] = _ln(
            e0.astype(f32) + _mm(em.astype(bf16), mat(6, d, d)) + vec(6),
            vec(7), vec(8))

        # --- node MLP: Linear(2d->2d) + LN + GELU + Linear(2d->d); residual + LN2 ---
        h_in = jnp.concatenate([msg.astype(bf16), hd], axis=-1)   # (TE, 2d)
        nm = _mm(h_in, mat(7, 2 * d, 2 * d)) + vec(9, 2 * d)
        nm = jax.nn.gelu(_ln(nm, vec(10, 2 * d), vec(11, 2 * d)), approximate=True)
        h_out_ref[...] = _ln(
            hn.astype(f32) + _mm(nm.astype(bf16), mat(9, 2 * d, d)) + vec(12),
            vec(13), vec(14))
        # TODO(synk): at d_emb=32 both output stores are 32-lane masked vst;
        # packing 4 edges per 128-lane output row only if store slot binds.

    return edge_kernel


# ----------------------------- weight packing -----------------------------

def _pack_weights(P, d, n_heads):
    dh = d // n_heads
    d2 = 2 * d

    # Fold o_proj into the node-MLP first layer:
    #   [msg@wo + bo | hd] @ wn1 == [msg | hd] @ [[wo@wn1m],[wn1d]] + (bn1 + bo@wn1m)
    wn1m, wn1d = P["wn1"][:d], P["wn1"][d:]
    wn1_f = jnp.concatenate([_mm_hi(P["wo"], wn1m), wn1d], axis=0)   # (2d, 2d)
    bn1_f = P["bn1"] + _mm_hi(P["bo"], wn1m)                          # (1, 2d)

    # Block-diagonal head-sum/broadcast matrix with 1/sqrt(d_head) folded in.
    head_of = np.arange(d) // dh
    S = jnp.asarray((head_of[:, None] == head_of[None, :]).astype(np.float32)
                    / math.sqrt(dh))                                  # (d, d)

    def pad_cols(a):
        return jnp.pad(a, ((0, 0), (0, d2 - a.shape[1])))

    # All matmul weights in ONE bf16 stack (single weight DMA stream):
    # rows [0,d)=wq [d,2d)=wk [2d,3d)=wv [3d,6d)=we1 [6d,7d)=we2
    #      [7d,9d)=wn1_f [9d,11d)=wn2 [11d,12d)=S
    mats = jnp.concatenate(
        [pad_cols(P["wq"]), pad_cols(P["wk"]), pad_cols(P["wv"]),
         pad_cols(P["we1"]), pad_cols(P["we2"]),
         wn1_f, pad_cols(P["wn2"]), pad_cols(S)],
        axis=0).astype(jnp.bfloat16)                                   # (12d, 2d)

    # All bias / LayerNorm vectors in ONE f32 stack (kept f32 for LN accuracy).
    vec_list = [P["bq"], P["bk"], P["bv"],
                P["be1"], P["ge1"], P["bge1"], P["be2"], P["g_ln1"], P["b_ln1"],
                bn1_f, P["gn1"], P["bgn1"],
                P["bn2"], P["g_ln2"], P["b_ln2"],
                jnp.zeros((1, d2), jnp.float32)]                       # pad to 16 rows
    vecs = jnp.concatenate([pad_cols(v) for v in vec_list], axis=0)    # (16, 2d)
    return mats, vecs


# ----------------------------- wrapper -----------------------------

def pignn_forward(h, e, edge_index, batch_idx, params, n_heads, n_batches,
                  tile_e=1024):
    N, d = h.shape
    E = e.shape[0]
    assert d % n_heads == 0
    assert E == N, "module's `h + h_update` broadcast requires n_edges == n_nodes"
    assert E % 8 == 0

    src, dst = edge_index[0], edge_index[1]
    # bf16 row streams: default MXU precision truncates to bf16 anyway, so this
    # halves HBM/DMA bytes without changing matmul numerics.
    # TODO(synk): gather could move in-kernel (scalar-prefetch + pl.Element row
    # gather) for d >= 128; at d=32 a row is only 64 B so it stays in the wrapper.
    h_b = h.astype(jnp.bfloat16)
    e_b = e.astype(jnp.bfloat16)
    hs = h_b[src]
    hd = h_b[dst]

    mats, vecs = _pack_weights(params, d, n_heads)

    # ---- generation-aware VMEM budget & edge-tile choice ----
    def vmem_estimate(t):
        row_in = 4 * 2 * t * d * 2            # 4 bf16 input streams, double-buffered
        row_out = 2 * 2 * t * d * 4           # 2 f32 output streams, double-buffered
        weights = 2 * (int(mats.size) * 2 + int(vecs.size) * 4)
        interm = 20 * t * d * 4               # q/k/v/scores/msg/e_in/h_in/em/nm/...
        return int(row_in + row_out + weights + interm) + (2 << 20)

    try:
        vmem_cap = int(getattr(pltpu.get_tpu_info(), "vmem_capacity_bytes",
                               128 << 20))
    except Exception:
        vmem_cap = 64 << 20
    # Leave compiler/internal-scratch headroom (esp. v7x: 64 MiB physical/TC).
    headroom = (16 << 20) if vmem_cap >= (128 << 20) else (12 << 20)
    vmem_ceiling = max(vmem_cap - headroom, 16 << 20)

    cands = sorted({t for t in range(8, E + 1, 8) if E % t == 0}, reverse=True)
    multi = [t for t in cands if E // t >= 2]     # >=2 grid steps -> both TCs on v7x
    pool = multi if multi else cands
    pool = [t for t in pool if t <= tile_e] or [pool[-1]]
    tile_e = next((t for t in pool if vmem_estimate(t) <= vmem_ceiling), pool[-1])
    vmem_limit = int(min(max(vmem_estimate(tile_e), 32 << 20), vmem_ceiling))

    row_spec = pl.BlockSpec((tile_e, d), lambda i: (i, 0))
    # TODO(synk): weight streams keep the default double-buffered BlockSpec;
    # pipeline_mode=pl.Buffered(1) (constant index_map) would halve their VMEM.
    full = lambda a: pl.BlockSpec(a.shape, lambda i: (0, 0))

    e_new, h_pre = pl.pallas_call(
        _make_edge_kernel(d, n_heads),
        out_shape=(jax.ShapeDtypeStruct((E, d), jnp.float32),
                   jax.ShapeDtypeStruct((E, d), jnp.float32)),
        grid=(E // tile_e,),
        in_specs=[row_spec, row_spec, row_spec, row_spec, full(mats), full(vecs)],
        out_specs=(row_spec, row_spec),
        compiler_params=pltpu.CompilerParams(
            dimension_semantics=("parallel",),
            vmem_limit_bytes=vmem_limit),
    )(hs, hd, e_b, h_b, mats, vecs)

    # scatter_mean over batch + global gate: tiny (n_batches, d) work, kept in
    # plain JAX — a pallas_call here is pure launch/prologue overhead.
    P = params
    counts = jax.ops.segment_sum(jnp.ones((N,), jnp.float32), batch_idx,
                                 num_segments=n_batches)
    sums = jax.ops.segment_sum(h_pre, batch_idx, num_segments=n_batches)
    h_global = sums / jnp.maximum(counts, 1.0)[:, None]
    t = _mm_hi(h_global, P["wg1"]) + P["bg1"]
    t = jax.nn.gelu(_ln(t, P["gg"], P["bgg"]), approximate=False)
    gates = jax.nn.sigmoid(_mm_hi(t, P["wg2"]) + P["bg2"])

    h_new = h_pre * gates[batch_idx]
    return h_new, e_new


# ----------------------------- pure-JAX reference -----------------------------

def reference_forward(h, e, edge_index, batch_idx, P, n_heads, n_batches):
    src, dst = edge_index[0], edge_index[1]
    N, d = h.shape
    dh = d // n_heads
    hs, hd = h[src], h[dst]
    q = (_mm_hi(hd, P["wq"]) + P["bq"]).reshape(-1, n_heads, dh)
    k = (_mm_hi(hs, P["wk"]) + P["bk"]).reshape(-1, n_heads, dh)
    v = (_mm_hi(hs, P["wv"]) + P["bv"]).reshape(-1, n_heads, dh)
    scores = jnp.einsum("nhd,nhd->nh", q, k) / math.sqrt(dh)
    attn = jax.nn.softmax(scores, axis=1)
    msg = (attn[:, :, None] * v).reshape(-1, d)
    msg = _mm_hi(msg, P["wo"]) + P["bo"]

    e_in = jnp.concatenate([hs, e, hd], axis=-1)
    em = _mm_hi(e_in, P["we1"]) + P["be1"]
    em = jax.nn.gelu(_ln(em, P["ge1"], P["bge1"]), approximate=False)
    e_new = _ln(e + _mm_hi(em, P["we2"]) + P["be2"], P["g_ln1"], P["b_ln1"])

    h_in = jnp.concatenate([msg, hd], axis=-1)
    nm = _mm_hi(h_in, P["wn1"]) + P["bn1"]
    nm = jax.nn.gelu(_ln(nm, P["gn1"], P["bgn1"]), approximate=False)
    h_pre = _ln(h + _mm_hi(nm, P["wn2"]) + P["bn2"], P["g_ln2"], P["b_ln2"])

    counts = jax.ops.segment_sum(jnp.ones((N,), jnp.float32), batch_idx,
                                 num_segments=n_batches)
    sums = jax.ops.segment_sum(h_pre, batch_idx, num_segments=n_batches)
    h_global = sums / jnp.maximum(counts, 1.0)[:, None]
    t = _mm_hi(h_global, P["wg1"]) + P["bg1"]
    t = jax.nn.gelu(_ln(t, P["gg"], P["bgg"]), approximate=False)
    gates = jax.nn.sigmoid(_mm_hi(t, P["wg2"]) + P["bg2"])
    return h_pre * gates[batch_idx], e_new


# ----------------------------- parameter init -----------------------------

def init_params(key, d):
    d2 = 2 * d
    keys = iter(jax.random.split(key, 40))

    def lin(fin, fout):
        w = jax.random.normal(next(keys), (fin, fout), jnp.float32) / np.sqrt(fin)
        b = 0.01 * jax.random.normal(next(keys), (1, fout), jnp.float32)
        return w, b

    P = {}
    P["wq"], P["bq"] = lin(d, d)
    P["wk"], P["bk"] = lin(d, d)
    P["wv"], P["bv"] = lin(d, d)
    P["wo"], P["bo"] = lin(d, d)
    # edge_mlp: Linear(3d->d), LayerNorm(d), GELU, Dropout, Linear(d->d)
    P["we1"], P["be1"] = lin(3 * d, d)
    P["ge1"], P["bge1"] = jnp.ones((1, d), jnp.float32), jnp.zeros((1, d), jnp.float32)
    P["we2"], P["be2"] = lin(d, d)
    P["g_ln1"], P["b_ln1"] = jnp.ones((1, d), jnp.float32), jnp.zeros((1, d), jnp.float32)
    # node_mlp: Linear(2d->2d), LayerNorm(2d), GELU, Dropout, Linear(2d->d)
    P["wn1"], P["bn1"] = lin(2 * d, d2)
    P["gn1"], P["bgn1"] = jnp.ones((1, d2), jnp.float32), jnp.zeros((1, d2), jnp.float32)
    P["wn2"], P["bn2"] = lin(d2, d)
    P["g_ln2"], P["b_ln2"] = jnp.ones((1, d), jnp.float32), jnp.zeros((1, d), jnp.float32)
    # global_gate: Linear(d->d), LayerNorm(d), GELU, Linear(d->d), Sigmoid
    P["wg1"], P["bg1"] = lin(d, d)
    P["gg"], P["bgg"] = jnp.ones((1, d), jnp.float32), jnp.zeros((1, d), jnp.float32)
    P["wg2"], P["bg2"] = lin(d, d)
    return P


# ----------------------------- main -----------------------------

if __name__ == "__main__":
    d_emb, n_heads = 32, 4
    n_nodes = 64
    n_edges = 64          # must equal n_nodes (see layout note above)
    n_batches = 2

    key = jax.random.PRNGKey(0)
    k_h, k_e, k_s, k_d, k_p = jax.random.split(key, 5)
    h = jax.random.normal(k_h, (n_nodes, d_emb), jnp.float32)
    e = jax.random.normal(k_e, (n_edges, d_emb), jnp.float32)
    src = jax.random.randint(k_s, (n_edges,), 0, n_nodes, dtype=jnp.int32)
    dst = jax.random.randint(k_d, (n_edges,), 0, n_nodes, dtype=jnp.int32)
    edge_index = jnp.stack([src, dst])
    batch_idx = jnp.concatenate([jnp.zeros((n_nodes // 2,), jnp.int32),
                                 jnp.ones((n_nodes // 2,), jnp.int32)])

    params = init_params(k_p, d_emb)

    h_out, e_out = pignn_forward(h, e, edge_index, batch_idx, params,
                                 n_heads, n_batches)
    jax.block_until_ready((h_out, e_out))

    h_ref, e_ref = reference_forward(h, e, edge_index, batch_idx, params,
                                     n_heads, n_batches)
    # Tolerance vs. the f32/HIGHEST exact-GELU golden reference: the kernel uses
    # bf16 row/weight I/O (single-pass MXU), tanh-approx GELU and an approx
    # reciprocal in the head softmax.
    np.testing.assert_allclose(np.asarray(h_out), np.asarray(h_ref),
                               rtol=2e-2, atol=3e-2)
    np.testing.assert_allclose(np.asarray(e_out), np.asarray(e_ref),
                               rtol=2e-2, atol=3e-2)
    print("KERNEL_OK")
</pallas_src>

<mosaic_0001>
module attributes {stable_mosaic.version = 11 : i64} {
  func.func @edge_kernel(%arg0: i32, %arg1: memref<32x32xbf16, #tpu.memory_space<vmem>>, %arg2: memref<32x32xbf16, #tpu.memory_space<vmem>>, %arg3: memref<32x32xbf16, #tpu.memory_space<vmem>>, %arg4: memref<32x32xbf16, #tpu.memory_space<vmem>>, %arg5: memref<384x64xbf16, #tpu.memory_space<vmem>>, %arg6: memref<16x64xf32, #tpu.memory_space<vmem>>, %arg7: memref<32x32xf32, #tpu.memory_space<vmem>>, %arg8: memref<32x32xf32, #tpu.memory_space<vmem>>) attributes {dimension_semantics = [#tpu.dimension_semantics<parallel>], iteration_bounds = array<i64: 2>, scalar_prefetch = 0 : i64, scratch_operands = 0 : i64, tpu.core_type = #tpu.core_type<tc>, window_params = [{transform_indices = @transform_0, window_bounds = array<i64: 32, 32>}, {transform_indices = @transform_1, window_bounds = array<i64: 32, 32>}, {transform_indices = @transform_2, window_bounds = array<i64: 32, 32>}, {transform_indices = @transform_3, window_bounds = array<i64: 32, 32>}, {pipeline_mode = #tpu.pipeline_mode<synchronous>, transform_indices = @transform_4, window_bounds = array<i64: 384, 64>}, {pipeline_mode = #tpu.pipeline_mode<synchronous>, transform_indices = @transform_5, window_bounds = array<i64: 16, 64>}, {transform_indices = @transform_6, window_bounds = array<i64: 32, 32>}, {transform_indices = @transform_7, window_bounds = array<i64: 32, 32>}]} {
    %c0 = arith.constant 0 : index
    %c0_0 = arith.constant 0 : index
    %0 = vector.load %arg1[%c0, %c0_0] : memref<32x32xbf16, #tpu.memory_space<vmem>>, vector<32x32xbf16>
    %c0_1 = arith.constant 0 : index
    %c0_2 = arith.constant 0 : index
    %1 = vector.load %arg2[%c0_1, %c0_2] : memref<32x32xbf16, #tpu.memory_space<vmem>>, vector<32x32xbf16>
    %c0_3 = arith.constant 0 : index
    %c0_4 = arith.constant 0 : index
    %2 = vector.load %arg3[%c0_3, %c0_4] : memref<32x32xbf16, #tpu.memory_space<vmem>>, vector<32x32xbf16>
    %c0_5 = arith.constant 0 : index
    %c0_6 = arith.constant 0 : index
    %3 = vector.load %arg4[%c0_5, %c0_6] : memref<32x32xbf16, #tpu.memory_space<vmem>>, vector<32x32xbf16>
    %c0_7 = arith.constant 0 : index
    %c0_8 = arith.constant 0 : index
    %4 = vector.load %arg5[%c0_7, %c0_8] : memref<384x64xbf16, #tpu.memory_space<vmem>>, vector<32x32xbf16>
    %cst = arith.constant dense<0.000000e+00> : vector<32x32xf32>
    %5 = tpu.matmul %1, %4, %cst {dimension_numbers = #tpu.dot_dimension_numbers<[1], [0], [0], [1], [0, 0, 1, 1], [], []>} : vector<32x32xbf16>, vector<32x32xbf16>, vector<32x32xf32> -> vector<32x32xf32>
    %c0_9 = arith.constant 0 : index
    %c0_10 = arith.constant 0 : index
    %6 = vector.load %arg6[%c0_9, %c0_10] : memref<16x64xf32, #tpu.memory_space<vmem>>, vector<1x32xf32>
    %7 = vector.broadcast %6 : vector<1x32xf32> to vector<32x32xf32>
    %8 = arith.addf %5, %7 : vector<32x32xf32>
    %c32 = arith.constant 32 : index
    %c0_11 = arith.constant 0 : index
    %9 = vector.load %arg5[%c32, %c0_11] : memref<384x64xbf16, #tpu.memory_space<vmem>>, vector<32x32xbf16>
    %cst_12 = arith.constant dense<0.000000e+00> : vector<32x32xf32>
    %10 = tpu.matmul %0, %9, %cst_12 {dimension_numbers = #tpu.dot_dimension_numbers<[1], [0], [0], [1], [0, 0, 1, 1], [], []>} : vector<32x32xbf16>, vector<32x32xbf16>, vector<32x32xf32> -> vector<32x32xf32>
    %c1 = arith.constant 1 : index
    %c0_13 = arith.constant 0 : index
    %11 = vector.load %arg6[%c1, %c0_13] : memref<16x64xf32, #tpu.memory_space<vmem>>, vector<1x32xf32>
    %12 = vector.broadcast %11 : vector<1x32xf32> to vector<32x32xf32>
    %13 = arith.addf %10, %12 : vector<32x32xf32>
    %c64 = arith.constant 64 : index
    %c0_14 = arith.constant 0 : index
    %14 = vector.load %arg5[%c64, %c0_14] : memref<384x64xbf16, #tpu.memory_space<vmem>>, vector<32x32xbf16>
    %cst_15 = arith.constant dense<0.000000e+00> : vector<32x32xf32>
    %15 = tpu.matmul %0, %14, %cst_15 {dimension_numbers = #tpu.dot_dimension_numbers<[1], [0], [0], [1], [0, 0, 1, 1], [], []>} : vector<32x32xbf16>, vector<32x32xbf16>, vector<32x32xf32> -> vector<32x32xf32>
    %c2 = arith.constant 2 : index
    %c0_16 = arith.constant 0 : index
    %16 = vector.load %arg6[%c2, %c0_16] : memref<16x64xf32, #tpu.memory_space<vmem>>, vector<1x32xf32>
    %17 = vector.broadcast %16 : vector<1x32xf32> to vector<32x32xf32>
    %18 = arith.addf %15, %17 : vector<32x32xf32>
    %19 = arith.mulf %8, %13 : vector<32x32xf32>
    %20 = arith.truncf %19 : vector<32x32xf32> to vector<32x32xbf16>
    %c352 = arith.constant 352 : index
    %c0_17 = arith.constant 0 : index
    %21 = vector.load %arg5[%c352, %c0_17] : memref<384x64xbf16, #tpu.memory_space<vmem>>, vector<32x32xbf16>
    %cst_18 = arith.constant dense<0.000000e+00> : vector<32x32xf32>
    %22 = tpu.matmul %20, %21, %cst_18 {dimension_numbers = #tpu.dot_dimension_numbers<[1], [0], [0], [1], [0, 0, 1, 1], [], []>} : vector<32x32xbf16>, vector<32x32xbf16>, vector<32x32xf32> -> vector<32x32xf32>
    %cst_19 = arith.constant dense<0xFF800000> : vector<32xf32>
    %23 = vector.multi_reduction <maximumf>, %22, %cst_19 [1] : vector<32x32xf32> to vector<32xf32>
    %24 = vector.shape_cast %23 : vector<32xf32> to vector<32x1xf32>
    %25 = vector.broadcast %24 : vector<32x1xf32> to vector<32x32xf32>
    %26 = arith.subf %22, %25 : vector<32x32xf32>
    %27 = math.exp %26 : vector<32x32xf32>
    %cst_20 = arith.constant dense<0.000000e+00> : vector<32xf32>
    %28 = vector.multi_reduction <add>, %27, %cst_20 [1] : vector<32x32xf32> to vector<32xf32>
    %29 = vector.shape_cast %28 : vector<32xf32> to vector<32x1xf32>
    %30 = tpu.reciprocal %29 {approx = true} : vector<32x1xf32> -> vector<32x1xf32>
    %cst_21 = arith.constant 8.000000e+00 : f32
    %31 = vector.broadcast %cst_21 : f32 to vector<32x1xf32>
    %32 = arith.mulf %31, %30 : vector<32x1xf32>
    %33 = vector.broadcast %32 : vector<32x1xf32> to vector<32x32xf32>
    %34 = arith.mulf %27, %33 : vector<32x32xf32>
    %35 = arith.mulf %34, %18 : vector<32x32xf32>
    %36 = tpu.concatenate %0, %2, %1 in 1 : vector<32x32xbf16>, vector<32x32xbf16>, vector<32x32xbf16> -> vector<32x96xbf16>
    %c96 = arith.constant 96 : index
    %c0_22 = arith.constant 0 : index
    %37 = vector.load %arg5[%c96, %c0_22] : memref<384x64xbf16, #tpu.memory_space<vmem>>, vector<96x32xbf16>
    %cst_23 = arith.constant dense<0.000000e+00> : vector<32x32xf32>
    %38 = tpu.matmul %36, %37, %cst_23 {dimension_numbers = #tpu.dot_dimension_numbers<[1], [0], [0], [1], [0, 0, 1, 1], [], []>} : vector<32x96xbf16>, vector<96x32xbf16>, vector<32x32xf32> -> vector<32x32xf32>
    %c3 = arith.constant 3 : index
    %c0_24 = arith.constant 0 : index
    %39 = vector.load %arg6[%c3, %c0_24] : memref<16x64xf32, #tpu.memory_space<vmem>>, vector<1x32xf32>
    %40 = vector.broadcast %39 : vector<1x32xf32> to vector<32x32xf32>
    %41 = arith.addf %38, %40 : vector<32x32xf32>
    %c4 = arith.constant 4 : index
    %c0_25 = arith.constant 0 : index
    %42 = vector.load %arg6[%c4, %c0_25] : memref<16x64xf32, #tpu.memory_space<vmem>>, vector<1x32xf32>
    %c5 = arith.constant 5 : index
    %c0_26 = arith.constant 0 : index
    %43 = vector.load %arg6[%c5, %c0_26] : memref<16x64xf32, #tpu.memory_space<vmem>>, vector<1x32xf32>
    %cst_27 = arith.constant dense<0.000000e+00> : vector<32xf32>
    %44 = vector.multi_reduction <add>, %41, %cst_27 [1] : vector<32x32xf32> to vector<32xf32>
    %45 = vector.shape_cast %44 : vector<32xf32> to vector<32x1xf32>
    %cst_28 = arith.constant 3.200000e+01 : f32
    %46 = vector.broadcast %cst_28 : f32 to vector<32x1xf32>
    %47 = arith.divf %45, %46 : vector<32x1xf32>
    %48 = vector.broadcast %47 : vector<32x1xf32> to vector<32x32xf32>
    %49 = arith.subf %41, %48 : vector<32x32xf32>
    %50 = arith.mulf %49, %49 : vector<32x32xf32>
    %cst_29 = arith.constant dense<0.000000e+00> : vector<32xf32>
    %51 = vector.multi_reduction <add>, %50, %cst_29 [1] : vector<32x32xf32> to vector<32xf32>
    %52 = vector.shape_cast %51 : vector<32xf32> to vector<32x1xf32>
    %cst_30 = arith.constant 3.200000e+01 : f32
    %53 = vector.broadcast %cst_30 : f32 to vector<32x1xf32>
    %54 = arith.divf %52, %53 : vector<32x1xf32>
    %cst_31 = arith.constant 9.99999974E-6 : f32
    %55 = vector.broadcast %cst_31 : f32 to vector<32x1xf32>
    %56 = arith.addf %54, %55 : vector<32x1xf32>
    %57 = math.rsqrt %56 : vector<32x1xf32>
    %58 = vector.broadcast %57 : vector<32x1xf32> to vector<32x32xf32>
    %59 = arith.mulf %49, %58 : vector<32x32xf32>
    %60 = vector.broadcast %42 : vector<1x32xf32> to vector<32x32xf32>
    %61 = arith.mulf %59, %60 : vector<32x32xf32>
    %62 = vector.broadcast %43 : vector<1x32xf32> to vector<32x32xf32>
    %63 = arith.addf %61, %62 : vector<32x32xf32>
    %64 = arith.mulf %63, %63 : vector<32x32xf32>
    %65 = arith.mulf %63, %64 : vector<32x32xf32>
    %cst_32 = arith.constant 4.471500e-02 : f32
    %66 = vector.broadcast %cst_32 : f32 to vector<32x32xf32>
    %67 = arith.mulf %66, %65 : vector<32x32xf32>
    %68 = arith.addf %63, %67 : vector<32x32xf32>
    %cst_33 = arith.constant 0.797884583 : f32
    %69 = vector.broadcast %cst_33 : f32 to vector<32x32xf32>
    %70 = arith.mulf %69, %68 : vector<32x32xf32>
    %71 = math.tanh %70 : vector<32x32xf32>
    %cst_34 = arith.constant 1.000000e+00 : f32
    %72 = vector.broadcast %cst_34 : f32 to vector<32x32xf32>
    %73 = arith.addf %72, %71 : vector<32x32xf32>
    %cst_35 = arith.constant 5.000000e-01 : f32
    %74 = vector.broadcast %cst_35 : f32 to vector<32x32xf32>
    %75 = arith.mulf %74, %73 : vector<32x32xf32>
    %76 = arith.mulf %63, %75 : vector<32x32xf32>
    %77 = arith.extf %2 : vector<32x32xbf16> to vector<32x32xf32>
    %78 = arith.truncf %76 : vector<32x32xf32> to vector<32x32xbf16>
    %c192 = arith.constant 192 : index
    %c0_36 = arith.constant 0 : index
    %79 = vector.load %arg5[%c192, %c0_36] : memref<384x64xbf16, #tpu.memory_space<vmem>>, vector<32x32xbf16>
    %cst_37 = arith.constant dense<0.000000e+00> : vector<32x32xf32>
    %80 = tpu.matmul %78, %79, %cst_37 {dimension_numbers = #tpu.dot_dimension_numbers<[1], [0], [0], [1], [0, 0, 1, 1], [], []>} : vector<32x32xbf16>, vector<32x32xbf16>, vector<32x32xf32> -> vector<32x32xf32>
    %81 = arith.addf %77, %80 : vector<32x32xf32>
    %c6 = arith.constant 6 : index
    %c0_38 = arith.constant 0 : index
    %82 = vector.load %arg6[%c6, %c0_38] : memref<16x64xf32, #tpu.memory_space<vmem>>, vector<1x32xf32>
    %83 = vector.broadcast %82 : vector<1x32xf32> to vector<32x32xf32>
    %84 = arith.addf %81, %83 : vector<32x32xf32>
    %c7 = arith.constant 7 : index
    %c0_39 = arith.constant 0 : index
    %85 = vector.load %arg6[%c7, %c0_39] : memref<16x64xf32, #tpu.memory_space<vmem>>, vector<1x32xf32>
    %c8 = arith.constant 8 : index
    %c0_40 = arith.constant 0 : index
    %86 = vector.load %arg6[%c8, %c0_40] : memref<16x64xf32, #tpu.memory_space<vmem>>, vector<1x32xf32>
    %cst_41 = arith.constant dense<0.000000e+00> : vector<32xf32>
    %87 = vector.multi_reduction <add>, %84, %cst_41 [1] : vector<32x32xf32> to vector<32xf32>
    %88 = vector.shape_cast %87 : vector<32xf32> to vector<32x1xf32>
    %cst_42 = arith.constant 3.200000e+01 : f32
    %89 = vector.broadcast %cst_42 : f32 to vector<32x1xf32>
    %90 = arith.divf %88, %89 : vector<32x1xf32>
    %91 = vector.broadcast %90 : vector<32x1xf32> to vector<32x32xf32>
    %92 = arith.subf %84, %91 : vector<32x32xf32>
    %93 = arith.mulf %92, %92 : vector<32x32xf32>
    %cst_43 = arith.constant dense<0.000000e+00> : vector<32xf32>
    %94 = vector.multi_reduction <add>, %93, %cst_43 [1] : vector<32x32xf32> to vector<32xf32>
    %95 = vector.shape_cast %94 : vector<32xf32> to vector<32x1xf32>
    %cst_44 = arith.constant 3.200000e+01 : f32
    %96 = vector.broadcast %cst_44 : f32 to vector<32x1xf32>
    %97 = arith.divf %95, %96 : vector<32x1xf32>
    %cst_45 = arith.constant 9.99999974E-6 : f32
    %98 = vector.broadcast %cst_45 : f32 to vector<32x1xf32>
    %99 = arith.addf %97, %98 : vector<32x1xf32>
    %100 = math.rsqrt %99 : vector<32x1xf32>
    %101 = vector.broadcast %100 : vector<32x1xf32> to vector<32x32xf32>
    %102 = arith.mulf %92, %101 : vector<32x32xf32>
    %103 = vector.broadcast %85 : vector<1x32xf32> to vector<32x32xf32>
    %104 = arith.mulf %102, %103 : vector<32x32xf32>
    %105 = vector.broadcast %86 : vector<1x32xf32> to vector<32x32xf32>
    %106 = arith.addf %104, %105 : vector<32x32xf32>
    %c0_46 = arith.constant 0 : index
    %c0_47 = arith.constant 0 : index
    %107 = vector.load %arg7[%c0_46, %c0_47] : memref<32x32xf32, #tpu.memory_space<vmem>>, vector<32x32xf32>
    tpu.vector_store %arg7[%c0_46, %c0_47], %106 {strides = array<i32>} : memref<32x32xf32, #tpu.memory_space<vmem>>, vector<32x32xf32>,
    %108 = arith.truncf %35 : vector<32x32xf32> to vector<32x32xbf16>
    %109 = tpu.concatenate %108, %1 in 1 : vector<32x32xbf16>, vector<32x32xbf16> -> vector<32x64xbf16>
    %c224 = arith.constant 224 : index
    %c0_48 = arith.constant 0 : index
    %110 = vector.load %arg5[%c224, %c0_48] : memref<384x64xbf16, #tpu.memory_space<vmem>>, vector<64x64xbf16>
    %cst_49 = arith.constant dense<0.000000e+00> : vector<32x64xf32>
    %111 = tpu.matmul %109, %110, %cst_49 {dimension_numbers = #tpu.dot_dimension_numbers<[1], [0], [0], [1], [0, 0, 1, 1], [], []>} : vector<32x64xbf16>, vector<64x64xbf16>, vector<32x64xf32> -> vector<32x64xf32>
    %c9 = arith.constant 9 : index
    %c0_50 = arith.constant 0 : index
    %112 = vector.load %arg6[%c9, %c0_50] : memref<16x64xf32, #tpu.memory_space<vmem>>, vector<1x64xf32>
    %113 = vector.broadcast %112 : vector<1x64xf32> to vector<32x64xf32>
    %114 = arith.addf %111, %113 : vector<32x64xf32>
    %c10 = arith.constant 10 : index
    %c0_51 = arith.constant 0 : index
    %115 = vector.load %arg6[%c10, %c0_51] : memref<16x64xf32, #tpu.memory_space<vmem>>, vector<1x64xf32>
    %c11 = arith.constant 11 : index
    %c0_52 = arith.constant 0 : index
    %116 = vector.load %arg6[%c11, %c0_52] : memref<16x64xf32, #tpu.memory_space<vmem>>, vector<1x64xf32>
    %cst_53 = arith.constant dense<0.000000e+00> : vector<32xf32>
    %117 = vector.multi_reduction <add>, %114, %cst_53 [1] : vector<32x64xf32> to vector<32xf32>
    %118 = vector.shape_cast %117 : vector<32xf32> to vector<32x1xf32>
    %cst_54 = arith.constant 6.400000e+01 : f32
    %119 = vector.broadcast %cst_54 : f32 to vector<32x1xf32>
    %120 = arith.divf %118, %119 : vector<32x1xf32>
    %121 = vector.broadcast %120 : vector<32x1xf32> to vector<32x64xf32>
    %122 = arith.subf %114, %121 : vector<32x64xf32>
    %123 = arith.mulf %122, %122 : vector<32x64xf32>
    %cst_55 = arith.constant dense<0.000000e+00> : vector<32xf32>
    %124 = vector.multi_reduction <add>, %123, %cst_55 [1] : vector<32x64xf32> to vector<32xf32>
    %125 = vector.shape_cast %124 : vector<32xf32> to vector<32x1xf32>
    %cst_56 = arith.constant 6.400000e+01 : f32
    %126 = vector.broadcast %cst_56 : f32 to vector<32x1xf32>
    %127 = arith.divf %125, %126 : vector<32x1xf32>
    %cst_57 = arith.constant 9.99999974E-6 : f32
    %128 = vector.broadcast %cst_57 : f32 to vector<32x1xf32>
    %129 = arith.addf %127, %128 : vector<32x1xf32>
    %130 = math.rsqrt %129 : vector<32x1xf32>
    %131 = vector.broadcast %130 : vector<32x1xf32> to vector<32x64xf32>
    %132 = arith.mulf %122, %131 : vector<32x64xf32>
    %133 = vector.broadcast %115 : vector<1x64xf32> to vector<32x64xf32>
    %134 = arith.mulf %132, %133 : vector<32x64xf32>
    %135 = vector.broadcast %116 : vector<1x64xf32> to vector<32x64xf32>
    %136 = arith.addf %134, %135 : vector<32x64xf32>
    %137 = arith.mulf %136, %136 : vector<32x64xf32>
    %138 = arith.mulf %136, %137 : vector<32x64xf32>
    %cst_58 = arith.constant 4.471500e-02 : f32
    %139 = vector.broadcast %cst_58 : f32 to vector<32x64xf32>
    %140 = arith.mulf %139, %138 : vector<32x64xf32>
    %141 = arith.addf %136, %140 : vector<32x64xf32>
    %cst_59 = arith.constant 0.797884583 : f32
    %142 = vector.broadcast %cst_59 : f32 to vector<32x64xf32>
    %143 = arith.mulf %142, %141 : vector<32x64xf32>
    %144 = math.tanh %143 : vector<32x64xf32>
    %cst_60 = arith.constant 1.000000e+00 : f32
    %145 = vector.broadcast %cst_60 : f32 to vector<32x64xf32>
    %146 = arith.addf %145, %144 : vector<32x64xf32>
    %cst_61 = arith.constant 5.000000e-01 : f32
    %147 = vector.broadcast %cst_61 : f32 to vector<32x64xf32>
    %148 = arith.mulf %147, %146 : vector<32x64xf32>
    %149 = arith.mulf %136, %148 : vector<32x64xf32>
    %150 = arith.extf %3 : vector<32x32xbf16> to vector<32x32xf32>
    %151 = arith.truncf %149 : vector<32x64xf32> to vector<32x64xbf16>
    %c288 = arith.constant 288 : index
    %c0_62 = arith.constant 0 : index
    %152 = vector.load %arg5[%c288, %c0_62] : memref<384x64xbf16, #tpu.memory_space<vmem>>, vector<64x32xbf16>
    %cst_63 = arith.constant dense<0.000000e+00> : vector<32x32xf32>
    %153 = tpu.matmul %151, %152, %cst_63 {dimension_numbers = #tpu.dot_dimension_numbers<[1], [0], [0], [1], [0, 0, 1, 1], [], []>} : vector<32x64xbf16>, vector<64x32xbf16>, vector<32x32xf32> -> vector<32x32xf32>
    %154 = arith.addf %150, %153 : vector<32x32xf32>
    %c12 = arith.constant 12 : index
    %c0_64 = arith.constant 0 : index
    %155 = vector.load %arg6[%c12, %c0_64] : memref<16x64xf32, #tpu.memory_space<vmem>>, vector<1x32xf32>
    %156 = vector.broadcast %155 : vector<1x32xf32> to vector<32x32xf32>
    %157 = arith.addf %154, %156 : vector<32x32xf32>
    %c13 = arith.constant 13 : index
    %c0_65 = arith.constant 0 : index
    %158 = vector.load %arg6[%c13, %c0_65] : memref<16x64xf32, #tpu.memory_space<vmem>>, vector<1x32xf32>
    %c14 = arith.constant 14 : index
    %c0_66 = arith.constant 0 : index
    %159 = vector.load %arg6[%c14, %c0_66] : memref<16x64xf32, #tpu.memory_space<vmem>>, vector<1x32xf32>
    %cst_67 = arith.constant dense<0.000000e+00> : vector<32xf32>
    %160 = vector.multi_reduction <add>, %157, %cst_67 [1] : vector<32x32xf32> to vector<32xf32>
    %161 = vector.shape_cast %160 : vector<32xf32> to vector<32x1xf32>
    %cst_68 = arith.constant 3.200000e+01 : f32
    %162 = vector.broadcast %cst_68 : f32 to vector<32x1xf32>
    %163 = arith.divf %161, %162 : vector<32x1xf32>
    %164 = vector.broadcast %163 : vector<32x1xf32> to vector<32x32xf32>
    %165 = arith.subf %157, %164 : vector<32x32xf32>
    %166 = arith.mulf %165, %165 : vector<32x32xf32>
    %cst_69 = arith.constant dense<0.000000e+00> : vector<32xf32>
    %167 = vector.multi_reduction <add>, %166, %cst_69 [1] : vector<32x32xf32> to vector<32xf32>
    %168 = vector.shape_cast %167 : vector<32xf32> to vector<32x1xf32>
    %cst_70 = arith.constant 3.200000e+01 : f32
    %169 = vector.broadcast %cst_70 : f32 to vector<32x1xf32>
    %170 = arith.divf %168, %169 : vector<32x1xf32>
    %cst_71 = arith.constant 9.99999974E-6 : f32
    %171 = vector.broadcast %cst_71 : f32 to vector<32x1xf32>
    %172 = arith.addf %170, %171 : vector<32x1xf32>
    %173 = math.rsqrt %172 : vector<32x1xf32>
    %174 = vector.broadcast %173 : vector<32x1xf32> to vector<32x32xf32>
    %175 = arith.mulf %165, %174 : vector<32x32xf32>
    %176 = vector.broadcast %158 : vector<1x32xf32> to vector<32x32xf32>
    %177 = arith.mulf %175, %176 : vector<32x32xf32>
    %178 = vector.broadcast %159 : vector<1x32xf32> to vector<32x32xf32>
    %179 = arith.addf %177, %178 : vector<32x32xf32>
    %c0_72 = arith.constant 0 : index
    %c0_73 = arith.constant 0 : index
    %180 = vector.load %arg8[%c0_72, %c0_73] : memref<32x32xf32, #tpu.memory_space<vmem>>, vector<32x32xf32>
    tpu.vector_store %arg8[%c0_72, %c0_73], %179 {strides = array<i32>} : memref<32x32xf32, #tpu.memory_space<vmem>>, vector<32x32xf32>,
    return
  }
  func.func @transform_0(%arg0: i32) -> (i32, i32) {
    %c0_i32 = arith.constant 0 : i32
    %c0_i32_0 = arith.constant 0 : i32
    return %arg0, %c0_i32 : i32, i32
  }
  func.func @transform_1(%arg0: i32) -> (i32, i32) {
    %c0_i32 = arith.constant 0 : i32
    %c0_i32_0 = arith.constant 0 : i32
    return %arg0, %c0_i32 : i32, i32
  }
  func.func @transform_2(%arg0: i32) -> (i32, i32) {
    %c0_i32 = arith.constant 0 : i32
    %c0_i32_0 = arith.constant 0 : i32
    return %arg0, %c0_i32 : i32, i32
  }
  func.func @transform_3(%arg0: i32) -> (i32, i32) {
    %c0_i32 = arith.constant 0 : i32
    %c0_i32_0 = arith.constant 0 : i32
    return %arg0, %c0_i32 : i32, i32
  }
  func.func @transform_4(%arg0: i32) -> (i32, i32) {
    %c0_i32 = arith.constant 0 : i32
    %c0_i32_0 = arith.constant 0 : i32
    %c0_i32_1 = arith.constant 0 : i32
    return %c0_i32, %c0_i32_0 : i32, i32
  }
  func.func @transform_5(%arg0: i32) -> (i32, i32) {
    %c0_i32 = arith.constant 0 : i32
    %c0_i32_0 = arith.constant 0 : i32
    %c0_i32_1 = arith.constant 0 : i32
    return %c0_i32, %c0_i32_0 : i32, i32
  }
  func.func @transform_6(%arg0: i32) -> (i32, i32) {
    %c0_i32 = arith.constant 0 : i32
    %c0_i32_0 = arith.constant 0 : i32
    return %arg0, %c0_i32 : i32, i32
  }
  func.func @transform_7(%arg0: i32) -> (i32, i32) {
    %c0_i32 = arith.constant 0 : i32
    %c0_i32_0 = arith.constant 0 : i32
    return %arg0, %c0_i32 : i32, i32
  }
}

</mosaic_0001>

<llo_original>
// kernel: tpu_custom_call.1
$region0: #{tpu_custom_call.1}
  #allocation0 [shape = 'u32[]', space=smem, size = 0x4, offset = 0x4, fixed_abs, tag = 'smem constant byte address 0x4 - core index']
  #allocation1 [shape = 'u32[144,128]{1,0:T(1,128)}', space=vmem, size = 0x12000, scoped, tag = 'internal scratch']
  %s0 = inlined_call_operand.vmem [shape: bf16[64,32], index: 0, kind: input, shape index: {}]
  %s1 = inlined_call_operand.vmem [shape: bf16[64,32], index: 1, kind: input, shape index: {}]
  %s2 = inlined_call_operand.vmem [shape: bf16[64,32], index: 2, kind: input, shape index: {}]
  %s3 = inlined_call_operand.vmem [shape: bf16[64,32], index: 3, kind: input, shape index: {}]
  %s4 = inlined_call_operand.vmem [shape: bf16[384,64], index: 4, kind: input, shape index: {}]
  %s5 = inlined_call_operand.vmem [shape: f32[16,64], index: 5, kind: input, shape index: {}]
  %s6 = inlined_call_operand.vmem [shape: f32[64,32], index: 6, kind: output, shape index: {0}]
  %s7 = inlined_call_operand.vmem [shape: f32[64,32], index: 7, kind: output, shape index: {1}]
  %8 = xla_tuple %s6, %s7
  %s9 = sld [smem:[#allocation0]]
  $region65: #{tpu_custom_call.1} parent=0
    _
  %s11 = ssub.s32 1, %s9
  %s12 = scalar_select 0, %s11, %s9
  loop: start=0, step=1, limit=4
  $region2: #{tpu_custom_call.1} parent=0 // loop_pre_header
    _
  $region3: #{tpu_custom_call.1} parent=0 // loop_header
    %s14 = sphi 0, %s18
    %p15 = scmp.ge.s32.totalorder %s14, 4
    %s24 = sphi 0, %s26
    %s27 = sphi 0, %s24
    %s28 = sphi 0, %s27
    %s44 = sphi 0, %s28
    %s50 = sphi 0, %s52
    %s53 = sphi 0, %s50
    %s54 = sphi 0, %s53
    %s70 = sphi 0, %s54
    %s76 = sphi 0, %s78
    %s79 = sphi 0, %s76
    %s80 = sphi 0, %s79
    %s96 = sphi 0, %s80
    %s102 = sphi 0, %s104
    %s105 = sphi 0, %s102
    %s106 = sphi 0, %s105
    %s122 = sphi 0, %s106
    %s126 = sphi 0, %s126
    %s128 = sphi 0, %s126
    %s129 = sphi 0, %s128
    %s143 = sphi 0, %s129
    %s147 = sphi 0, %s147
    %s149 = sphi 0, %s147
    %s150 = sphi 0, %s149
    %s164 = sphi 0, %s150
    %s170 = sphi 0, %s172
    %s173 = sphi 0, %s170
    %s174 = sphi 0, %s173
    %s190 = sphi 0, %s174
    %s196 = sphi 0, %s198
    %s199 = sphi 0, %s196
    %s200 = sphi 0, %s199
    %s216 = sphi 0, %s200
  $region4: #{tpu_custom_call.1} parent=0 // loop_header_branch
    %17 = sbr.rel (%p15) target = $region8
  $region5: #{tpu_custom_call.1} parent=0 // loop_body
    %s19 = ssub.s32 %s14, 1
    %s20 = ssub.s32 %s14, 2
    %s21 = sadd.s32 %s14, 1
    %s22 = ssub.s32 %s14, %s21
    %p23 = scmp.eq.s32.totalorder %s22, 0
    %s25 = sadd.s32 %s24, 1
    %s26 = scalar_select %p23, %s24, %s25
    %p29 = pneg %p23
    %p30 = scmp.eq.s32.totalorder %s14, 1
    %p31 = por %p29, %p30
    %p32 = scmp.ne.s32.totalorder %s24, %s27
    %p33 = scmp.eq.s32.totalorder %s14, 0
    %p34 = por %p32, %p33
    %p35 = scmp.ne.s32.totalorder %s24, %s27
    %p36 = scmp.eq.s32.totalorder %s19, 1
    %p37 = por %p35, %p36
    %p38 = scmp.ne.s32.totalorder %s27, %s28
    %p39 = scmp.eq.s32.totalorder %s19, 0
    %p40 = por %p38, %p39
    %p41 = scmp.ne.s32.totalorder %s27, %s28
    %p42 = scmp.eq.s32.totalorder %s20, 1
    %p43 = por %p41, %p42
    %p45 = scmp.ne.s32.totalorder %s28, %s44
    %p46 = scmp.eq.s32.totalorder %s20, 0
    %p47 = por %p45, %p46
    %s48 = ssub.s32 %s14, %s21
    %p49 = scmp.eq.s32.totalorder %s48, 0
    %s51 = sadd.s32 %s50, 1
    %s52 = scalar_select %p49, %s50, %s51
    %p55 = pneg %p49
    %p56 = scmp.eq.s32.totalorder %s14, 1
    %p57 = por %p55, %p56
    %p58 = scmp.ne.s32.totalorder %s50, %s53
    %p59 = scmp.eq.s32.totalorder %s14, 0
    %p60 = por %p58, %p59
    %p61 = scmp.ne.s32.totalorder %s50, %s53
    %p62 = scmp.eq.s32.totalorder %s19, 1
    %p63 = por %p61, %p62
    %p64 = scmp.ne.s32.totalorder %s53, %s54
    %p65 = scmp.eq.s32.totalorder %s19, 0
    %p66 = por %p64, %p65
    %p67 = scmp.ne.s32.totalorder %s53, %s54
    %p68 = scmp.eq.s32.totalorder %s20, 1
    %p69 = por %p67, %p68
    %p71 = scmp.ne.s32.totalorder %s54, %s70
    %p72 = scmp.eq.s32.totalorder %s20, 0
    %p73 = por %p71, %p72
    %s74 = ssub.s32 %s14, %s21
    %p75 = scmp.eq.s32.totalorder %s74, 0
    %s77 = sadd.s32 %s76, 1
    %s78 = scalar_select %p75, %s76, %s77
    %p81 = pneg %p75
    %p82 = scmp.eq.s32.totalorder %s14, 1
    %p83 = por %p81, %p82
    %p84 = scmp.ne.s32.totalorder %s76, %s79
    %p85 = scmp.eq.s32.totalorder %s14, 0
    %p86 = por %p84, %p85
    %p87 = scmp.ne.s32.totalorder %s76, %s79
    %p88 = scmp.eq.s32.totalorder %s19, 1
    %p89 = por %p87, %p88
    %p90 = scmp.ne.s32.totalorder %s79, %s80
    %p91 = scmp.eq.s32.totalorder %s19, 0
    %p92 = por %p90, %p91
    %p93 = scmp.ne.s32.totalorder %s79, %s80
    %p94 = scmp.eq.s32.totalorder %s20, 1
    %p95 = por %p93, %p94
    %p97 = scmp.ne.s32.totalorder %s80, %s96
    %p98 = scmp.eq.s32.totalorder %s20, 0
    %p99 = por %p97, %p98
    %s100 = ssub.s32 %s14, %s21
    %p101 = scmp.eq.s32.totalorder %s100, 0
    %s103 = sadd.s32 %s102, 1
    %s104 = scalar_select %p101, %s102, %s103
    %p107 = pneg %p101
    %p108 = scmp.eq.s32.totalorder %s14, 1
    %p109 = por %p107, %p108
    %p110 = scmp.ne.s32.totalorder %s102, %s105
    %p111 = scmp.eq.s32.totalorder %s14, 0
    %p112 = por %p110, %p111
    %p113 = scmp.ne.s32.totalorder %s102, %s105
    %p114 = scmp.eq.s32.totalorder %s19, 1
    %p115 = por %p113, %p114
    %p116 = scmp.ne.s32.totalorder %s105, %s106
    %p117 = scmp.eq.s32.totalorder %s19, 0
    %p118 = por %p116, %p117
    %p119 = scmp.ne.s32.totalorder %s105, %s106
    %p120 = scmp.eq.s32.totalorder %s20, 1
    %p121 = por %p119, %p120
    %p123 = scmp.ne.s32.totalorder %s106, %s122
    %p124 = scmp.eq.s32.totalorder %s20, 0
    %p125 = por %p123, %p124
    %s127 = sadd.s32 %s126, 1
    %p130 = scmp.eq.s32.totalorder %s14, 1
    %p131 = scmp.ne.s32.totalorder %s126, %s128
    %p132 = scmp.eq.s32.totalorder %s14, 0
    %p133 = por %p131, %p132
    %p134 = scmp.ne.s32.totalorder %s126, %s128
    %p135 = scmp.eq.s32.totalorder %s19, 1
    %p136 = por %p134, %p135
    %p137 = scmp.ne.s32.totalorder %s128, %s129
    %p138 = scmp.eq.s32.totalorder %s19, 0
    %p139 = por %p137, %p138
    %p140 = scmp.ne.s32.totalorder %s128, %s129
    %p141 = scmp.eq.s32.totalorder %s20, 1
    %p142 = por %p140, %p141
    %p144 = scmp.ne.s32.totalorder %s129, %s143
    %p145 = scmp.eq.s32.totalorder %s20, 0
    %p146 = por %p144, %p145
    %s148 = sadd.s32 %s147, 1
    %p151 = scmp.eq.s32.totalorder %s14, 1
    %p152 = scmp.ne.s32.totalorder %s147, %s149
    %p153 = scmp.eq.s32.totalorder %s14, 0
    %p154 = por %p152, %p153
    %p155 = scmp.ne.s32.totalorder %s147, %s149
    %p156 = scmp.eq.s32.totalorder %s19, 1
    %p157 = por %p155, %p156
    %p158 = scmp.ne.s32.totalorder %s149, %s150
    %p159 = scmp.eq.s32.totalorder %s19, 0
    %p160 = por %p158, %p159
    %p161 = scmp.ne.s32.totalorder %s149, %s150
    %p162 = scmp.eq.s32.totalorder %s20, 1
    %p163 = por %p161, %p162
    %p165 = scmp.ne.s32.totalorder %s150, %s164
    %p166 = scmp.eq.s32.totalorder %s20, 0
    %p167 = por %p165, %p166
    %s168 = ssub.s32 %s14, %s21
    %p169 = scmp.eq.s32.totalorder %s168, 0
    %s171 = sadd.s32 %s170, 1
    %s172 = scalar_select %p169, %s170, %s171
    %p175 = pneg %p169
    %p176 = scmp.eq.s32.totalorder %s14, 1
    %p177 = por %p175, %p176
    %p178 = scmp.ne.s32.totalorder %s170, %s173
    %p179 = scmp.eq.s32.totalorder %s14, 0
    %p180 = por %p178, %p179
    %p181 = scmp.ne.s32.totalorder %s170, %s173
    %p182 = scmp.eq.s32.totalorder %s19, 1
    %p183 = por %p181, %p182
    %p184 = scmp.ne.s32.totalorder %s173, %s174
    %p185 = scmp.eq.s32.totalorder %s19, 0
    %p186 = por %p184, %p185
    %p187 = scmp.ne.s32.totalorder %s173, %s174
    %p188 = scmp.eq.s32.totalorder %s20, 1
    %p189 = por %p187, %p188
    %p191 = scmp.ne.s32.totalorder %s174, %s190
    %p192 = scmp.eq.s32.totalorder %s20, 0
    %p193 = por %p191, %p192
    %s194 = ssub.s32 %s14, %s21
    %p195 = scmp.eq.s32.totalorder %s194, 0
    %s197 = sadd.s32 %s196, 1
    %s198 = scalar_select %p195, %s196, %s197
    %p201 = pneg %p195
    %p202 = scmp.eq.s32.totalorder %s14, 1
    %p203 = por %p201, %p202
    %p204 = scmp.ne.s32.totalorder %s196, %s199
    %p205 = scmp.eq.s32.totalorder %s14, 0
    %p206 = por %p204, %p205
    %p207 = scmp.ne.s32.totalorder %s196, %s199
    %p208 = scmp.eq.s32.totalorder %s19, 1
    %p209 = por %p207, %p208
    %p210 = scmp.ne.s32.totalorder %s199, %s200
    %p211 = scmp.eq.s32.totalorder %s19, 0
    %p212 = por %p210, %p211
    %p213 = scmp.ne.s32.totalorder %s199, %s200
    %p214 = scmp.eq.s32.totalorder %s20, 1
    %p215 = por %p213, %p214
    %p217 = scmp.ne.s32.totalorder %s200, %s216
    %p218 = scmp.eq.s32.totalorder %s20, 0
    %p219 = por %p217, %p218
    %p220 = scmp.le.s32.totalorder 1, %s14
    %p221 = scmp.lt.s32.totalorder %s14, 3
    %p222 = pnand %p220, %p221
    %p223 = pneg %p222
    // Predicated region
    $region9: #{tpu_custom_call.1} parent=5 // pred_check
      _
    $region10: #{tpu_custom_call.1} parent=5 // pred_check_branch
      %225 = sbr.rel (%p222) target = $region12
    $region11: #{tpu_custom_call.1} parent=5 // pred_region
      %s226 = ssub.s32 %s14, 1
      // Predicated region
      $region13: #{tpu_custom_call.1} parent=11 // pred_check
        %p227 = pneg %p139
      $region14: #{tpu_custom_call.1} parent=11 // pred_check_branch
        %229 = sbr.rel (%p227) target = $region16
      $region15: #{tpu_custom_call.1} parent=11 // pred_region
        _
      $region16: #{tpu_custom_call.1} parent=11 // pred_fallthru
        _
      // Predicated region
      $region17: #{tpu_custom_call.1} parent=11 // pred_check
        %p230 = pneg %p160
      $region18: #{tpu_custom_call.1} parent=11 // pred_check_branch
        %232 = sbr.rel (%p230) target = $region20
      $region19: #{tpu_custom_call.1} parent=11 // pred_region
        _
      $region20: #{tpu_custom_call.1} parent=11 // pred_fallthru
        _
    $region12: #{tpu_custom_call.1} parent=5 // pred_fallthru
      _
    %p233 = scmp.lt.s32.totalorder %s14, 2
    // Predicated region
    $region21: #{tpu_custom_call.1} parent=5 // pred_check
      %p234 = pneg %p233
    $region22: #{tpu_custom_call.1} parent=5 // pred_check_branch
      %236 = sbr.rel (%p234) target = $region24
    $region23: #{tpu_custom_call.1} parent=5 // pred_region
      // Predicated region
      $region25: #{tpu_custom_call.1} parent=23 // pred_check
        %p237 = pneg %p34
      $region26: #{tpu_custom_call.1} parent=23 // pred_check_branch
        %239 = sbr.rel (%p237) target = $region28
      $region27: #{tpu_custom_call.1} parent=23 // pred_region
        %s240 = smul.u32 4, %s14
        %p241 = scmp.lt.s32.totalorder %s240, 7
        %s242 = scalar_select %p241, %s240, 7
        %s243 = smul.addr %s242, 4
        %s244 = scalar_lea.vmem %s0, %s243
        %s245 = smul.u32 4, %s14
      $region28: #{tpu_custom_call.1} parent=23 // pred_fallthru
        _
      // Predicated region
      $region29: #{tpu_custom_call.1} parent=23 // pred_check
        %p246 = pneg %p60
      $region30: #{tpu_custom_call.1} parent=23 // pred_check_branch
        %248 = sbr.rel (%p246) target = $region32
      $region31: #{tpu_custom_call.1} parent=23 // pred_region
        %s249 = smul.u32 4, %s14
        %p250 = scmp.lt.s32.totalorder %s249, 7
        %s251 = scalar_select %p250, %s249, 7
        %s252 = smul.addr %s251, 4
        %s253 = scalar_lea.vmem %s1, %s252
        %s254 = smul.u32 4, %s14
      $region32: #{tpu_custom_call.1} parent=23 // pred_fallthru
        _
      // Predicated region
      $region33: #{tpu_custom_call.1} parent=23 // pred_check
        %p255 = pneg %p86
      $region34: #{tpu_custom_call.1} parent=23 // pred_check_branch
        %257 = sbr.rel (%p255) target = $region36
      $region35: #{tpu_custom_call.1} parent=23 // pred_region
        %s258 = smul.u32 4, %s14
        %p259 = scmp.lt.s32.totalorder %s258, 7
        %s260 = scalar_select %p259, %s258, 7
        %s261 = smul.addr %s260, 4
        %s262 = scalar_lea.vmem %s2, %s261
        %s263 = smul.u32 4, %s14
      $region36: #{tpu_custom_call.1} parent=23 // pred_fallthru
        _
      // Predicated region
      $region37: #{tpu_custom_call.1} parent=23 // pred_check
        %p264 = pneg %p112
      $region38: #{tpu_custom_call.1} parent=23 // pred_check_branch
        %266 = sbr.rel (%p264) target = $region40
      $region39: #{tpu_custom_call.1} parent=23 // pred_region
        %s267 = smul.u32 4, %s14
        %p268 = scmp.lt.s32.totalorder %s267, 7
        %s269 = scalar_select %p268, %s267, 7
        %s270 = smul.addr %s269, 4
        %s271 = scalar_lea.vmem %s3, %s270
        %s272 = smul.u32 4, %s14
      $region40: #{tpu_custom_call.1} parent=23 // pred_fallthru
        _
    $region24: #{tpu_custom_call.1} parent=5 // pred_fallthru
      _
    %p273 = scmp.le.s32.totalorder 1, %s14
    %p274 = scmp.lt.s32.totalorder %s14, 3
    %p275 = pnand %p273, %p274
    %p276 = pneg %p275
    // Predicated region
    $region41: #{tpu_custom_call.1} parent=5 // pred_check
      _
    $region42: #{tpu_custom_call.1} parent=5 // pred_check_branch
      %278 = sbr.rel (%p275) target = $region44
    $region43: #{tpu_custom_call.1} parent=5 // pred_region
      %s279 = ssub.s32 %s14, 1
      %s280 = smul.u32 4, %s19
      %p281 = scmp.lt.s32.totalorder %s280, 7
      %s282 = scalar_select %p281, %s280, 7
      %s283 = smul.addr %s282, 4
      %s284 = scalar_lea.vmem %s0, %s283
      %p285 = pneg %p40
      %p286 = pneg %p37
      %s287 = smul.u32 4, %s19
      %p288 = scmp.lt.s32.totalorder %s287, 7
      %s289 = scalar_select %p288, %s287, 7
      %s290 = smul.addr %s289, 4
      %s291 = scalar_lea.vmem %s1, %s290
      %p292 = pneg %p66
      %p293 = pneg %p63
      %s294 = smul.u32 4, %s19
      %p295 = scmp.lt.s32.totalorder %s294, 7
      %s296 = scalar_select %p295, %s294, 7
      %s297 = smul.addr %s296, 4
      %s298 = scalar_lea.vmem %s2, %s297
      %p299 = pneg %p92
      %p300 = pneg %p89
      %s301 = smul.u32 4, %s19
      %p302 = scmp.lt.s32.totalorder %s301, 7
      %s303 = scalar_select %p302, %s301, 7
      %s304 = smul.addr %s303, 4
      %s305 = scalar_lea.vmem %s3, %s304
      %p306 = pneg %p118
      %p307 = pneg %p115
      %p308 = pneg %p139
      %p309 = pneg %p136
      %p310 = pneg %p160
      %p311 = pneg %p157
      %p312 = pneg %p186
      %p313 = pneg %p183
      %s314 = smul.u32 4, %s19
      %p315 = scmp.lt.s32.totalorder %s314, 7
      %s316 = scalar_select %p315, %s314, 7
      %s317 = smul.addr %s316, 8
      %s318 = scalar_lea.vmem %s6, %s317
      %p319 = pneg %p212
      %p320 = pneg %p209
      %s321 = smul.u32 4, %s19
      %p322 = scmp.lt.s32.totalorder %s321, 7
      %s323 = scalar_select %p322, %s321, 7
      %s324 = smul.addr %s323, 8
      %s325 = scalar_lea.vmem %s7, %s324
      %s326 = smul.u32 4, %s19
      %p327 = scmp.lt.s32.totalorder %s326, 7
      %s328 = scalar_select %p327, %s326, 7
      %s329 = smul.addr %s328, 4
      %s330 = scalar_lea.vmem %s0, %s329
      %s331 = smul.u32 4, %s19
      %s332 = smul.u32 4, %s19
      %p333 = scmp.lt.s32.totalorder %s332, 7
      %s334 = scalar_select %p333, %s332, 7
      %s335 = smul.addr %s334, 4
      %s336 = scalar_lea.vmem %s1, %s335
      %s337 = smul.u32 4, %s19
      %s338 = smul.u32 4, %s19
      %p339 = scmp.lt.s32.totalorder %s338, 7
      %s340 = scalar_select %p339, %s338, 7
      %s341 = smul.addr %s340, 4
      %s342 = scalar_lea.vmem %s2, %s341
      %s343 = smul.u32 4, %s19
      %s344 = smul.u32 4, %s19
      %p345 = scmp.lt.s32.totalorder %s344, 7
      %s346 = scalar_select %p345, %s344, 7
      %s347 = smul.addr %s346, 4
      %s348 = scalar_lea.vmem %s3, %s347
      %s349 = smul.u32 4, %s19
      %s350 = smul.u32 4, %s19
      %p351 = scmp.lt.s32.totalorder %s350, 7
      %s352 = scalar_select %p351, %s350, 7
      %s353 = smul.addr %s352, 8
      %s354 = scalar_lea.vmem %s6, %s353
      %s355 = smul.u32 4, %s19
      %s356 = smul.u32 4, %s19
      %p357 = scmp.lt.s32.totalorder %s356, 7
      %s358 = scalar_select %p357, %s356, 7
      %s359 = smul.addr %s358, 8
      %s360 = scalar_lea.vmem %s7, %s359
      %s361 = smul.u32 4, %s19
      %v363 = vld [vmem:[%s330] sm:$0xf]
      %v364 = vld [vmem:[%s330 + $0x4] sm:$0xf]
      %v365 = vld [vmem:[%s330 + $0x8] sm:$0xf]
      %v366 = vld [vmem:[%s330 + $0xc] sm:$0xf]
      %v367 = vld [vmem:[%s336] sm:$0xf]
      %v368 = vld [vmem:[%s336 + $0x4] sm:$0xf]
      %v369 = vld [vmem:[%s336 + $0x8] sm:$0xf]
      %v370 = vld [vmem:[%s336 + $0xc] sm:$0xf]
      %v371 = vld [vmem:[%s342] sm:$0xf]
      %v372 = vld [vmem:[%s342 + $0x4] sm:$0xf]
      %v373 = vld [vmem:[%s342 + $0x8] sm:$0xf]
      %v374 = vld [vmem:[%s342 + $0xc] sm:$0xf]
      %v375 = vld [vmem:[%s348] sm:$0xf]
      %v376 = vld [vmem:[%s348 + $0x4] sm:$0xf]
      %v377 = vld [vmem:[%s348 + $0x8] sm:$0xf]
      %v378 = vld [vmem:[%s348 + $0xc] sm:$0xf]
      %v379 = vld [vmem:[%s4] sm:$0xf]
      %v380 = vld [vmem:[%s4 + $0x4] sm:$0xf]
      %v381 = vld [vmem:[%s4 + $0x8] sm:$0xf]
      %v382 = vld [vmem:[%s4 + $0xc] sm:$0xf]
      %v383 = vld [vmem:[%s5] sm:$0x1]
      %v384 = vlaneseq
      %v385 = vshrl.u32 %v384, 7
      %v386 = vsub.s32 0, %v385
      %v387 = vrot.slane %v383, %v386
      %v392 = vunpack.c.l.b16 %v367
      %v393 = vunpack.c.l.b16 %v368
      %v394 = vunpack.c.l.b16 %v369
      %v395 = vunpack.c.l.b16 %v370
      %v396 = vpack.c.b16 %v393, %v392
      %v397 = vpack.c.b16 %v395, %v394
      %v402 = vunpack.c.l.b16 %v379
      %v403 = vunpack.c.l.b16 %v380
      %v404 = vunpack.c.l.b16 %v381
      %v405 = vunpack.c.l.b16 %v382
      %v406 = vpack.c.b16 %v403, %v402
      %v407 = vpack.c.b16 %v405, %v404
      %vm410 = vcmask 261120
      %v412 = vsel %vm410, %v396, 0
      %v415 = vsel %vm410, %v397, 0
      %417 = vmatprep.subr.bf16.mxu0 0
      %418 = vmatpush1.bf16.msra.mxu0 %v406
      %419 = vmatprep.subr.bf16.mxu0 0
      %420 = vmatpush1.bf16.msra.mxu0 %v407
      %421 = vmatprep.subr.bf16.mxu0 0
      %422 = vmatpush1.bf16.msra.mxu0 0
      %423 = vmatprep.subr.bf16.mxu0 0
      %424 = vmatpush1.bf16.msra.mxu0 0
      %425 = vmatprep.subr.bf16.mxu0 0
      %426 = vmatpush1.bf16.msra.mxu0 0
      %427 = vmatprep.subr.bf16.mxu0 0
      %428 = vmatpush1.bf16.msra.mxu0 0
      %429 = vmatprep.subr.bf16.mxu0 0
      %430 = vmatpush1.bf16.msra.mxu0 0
      %431 = vmatprep.subr.bf16.mxu0 0
      %432 = vmatpush1.bf16.msra.mxu0 0
      %433 = vmatprep.subr.bf16.mxu0 0
      %434 = vmatpush1.bf16.msra.mxu0 0
      %435 = vmatprep.subr.bf16.mxu0 0
      %436 = vmatpush1.bf16.msra.mxu0 0
      %437 = vmatprep.subr.bf16.mxu0 0
      %438 = vmatpush1.bf16.msra.mxu0 0
      %439 = vmatprep.subr.bf16.mxu0 0
      %440 = vmatpush1.bf16.msra.mxu0 0
      %441 = vmatprep.subr.bf16.mxu0 0
      %442 = vmatpush1.bf16.msra.mxu0 0
      %443 = vmatprep.subr.bf16.mxu0 0
      %444 = vmatpush1.bf16.msra.mxu0 0
      %445 = vmatprep.subr.bf16.mxu0 0
      %446 = vmatpush1.bf16.msra.mxu0 0
      %447 = vmatprep.subr.bf16.mxu0 0
      %448 = vmatpush1.bf16.msra.mxu0 0
      %449 = vmatprep.mubr.bf16.mxu0 0
      %450 = vmatmul.mubr.bf16.gmra.mrb[0].mxu0 %v412
      %v451 = vpop.f32.mrb[0].mxu0
      %v452 = vadd.f32 %v387, %v451
      %v453 = vpop.f32.mrb[0].mxu0
      %v454 = vpop.f32.mrb[0].mxu0
      %v455 = vadd.f32 %v387, %v454
      %v456 = vpop.f32.mrb[0].mxu0
      %457 = vmatprep.mubr.bf16.mxu0 0
      %458 = vmatmul.mubr.bf16.gmra.mrb[0].mxu0 %v415
      %v459 = vpop.f32.mrb[0].mxu0
      %v460 = vadd.f32 %v387, %v459
      %v461 = vpop.f32.mrb[0].mxu0
      %v462 = vpop.f32.mrb[0].mxu0
      %v463 = vadd.f32 %v387, %v462
      %v464 = vpop.f32.mrb[0].mxu0
      %465 = vdwg.mxu0
      %v466 = vld [vmem:[%s4 + $0x10] sm:$0xf]
      %v467 = vld [vmem:[%s4 + $0x14] sm:$0xf]
      %v468 = vld [vmem:[%s4 + $0x18] sm:$0xf]
      %v469 = vld [vmem:[%s4 + $0x1c] sm:$0xf]
      %v470 = vld [vmem:[%s5 + $0x1] sm:$0x1]
      %v471 = vlaneseq
      %v472 = vshrl.u32 %v471, 7
      %v473 = vsub.s32 0, %v472
      %v474 = vrot.slane %v470, %v473
      %v479 = vunpack.c.l.b16 %v363
      %v480 = vunpack.c.l.b16 %v364
      %v481 = vunpack.c.l.b16 %v365
      %v482 = vunpack.c.l.b16 %v366
      %v483 = vpack.c.b16 %v480, %v479
      %v484 = vpack.c.b16 %v482, %v481
      %v489 = vunpack.c.l.b16 %v466
      %v490 = vunpack.c.l.b16 %v467
      %v491 = vunpack.c.l.b16 %v468
      %v492 = vunpack.c.l.b16 %v469
      %v493 = vpack.c.b16 %v490, %v489
      %v494 = vpack.c.b16 %v492, %v491
      %v498 = vsel %vm410, %v483, 0
      %v501 = vsel %vm410, %v484, 0
      %503 = vmatprep.subr.bf16.mxu0 0
      %504 = vmatpush1.bf16.msra.mxu0 %v493
      %505 = vmatprep.subr.bf16.mxu0 0
      %506 = vmatpush1.bf16.msra.mxu0 %v494
      %507 = vmatprep.subr.bf16.mxu0 0
      %508 = vmatpush1.bf16.msra.mxu0 0
      %509 = vmatprep.subr.bf16.mxu0 0
      %510 = vmatpush1.bf16.msra.mxu0 0
      %511 = vmatprep.subr.bf16.mxu0 0
      %512 = vmatpush1.bf16.msra.mxu0 0
      %513 = vmatprep.subr.bf16.mxu0 0
      %514 = vmatpush1.bf16.msra.mxu0 0
      %515 = vmatprep.subr.bf16.mxu0 0
      %516 = vmatpush1.bf16.msra.mxu0 0
      %517 = vmatprep.subr.bf16.mxu0 0
      %518 = vmatpush1.bf16.msra.mxu0 0
      %519 = vmatprep.subr.bf16.mxu0 0
      %520 = vmatpush1.bf16.msra.mxu0 0
      %521 = vmatprep.subr.bf16.mxu0 0
      %522 = vmatpush1.bf16.msra.mxu0 0
      %523 = vmatprep.subr.bf16.mxu0 0
      %524 = vmatpush1.bf16.msra.mxu0 0
      %525 = vmatprep.subr.bf16.mxu0 0
      %526 = vmatpush1.bf16.msra.mxu0 0
      %527 = vmatprep.subr.bf16.mxu0 0
      %528 = vmatpush1.bf16.msra.mxu0 0
      %529 = vmatprep.subr.bf16.mxu0 0
      %530 = vmatpush1.bf16.msra.mxu0 0
      %531 = vmatprep.subr.bf16.mxu0 0
      %532 = vmatpush1.bf16.msra.mxu0 0
      %533 = vmatprep.subr.bf16.mxu0 0
      %534 = vmatpush1.bf16.msra.mxu0 0
      %535 = vmatprep.mubr.bf16.mxu0 0
      %536 = vmatmul.mubr.bf16.gmra.mrb[0].mxu0 %v498
      %v537 = vpop.f32.mrb[0].mxu0
      %v538 = vadd.f32 %v474, %v537
      %v539 = vpop.f32.mrb[0].mxu0
      %v540 = vpop.f32.mrb[0].mxu0
      %v541 = vadd.f32 %v474, %v540
      %v542 = vpop.f32.mrb[0].mxu0
      %543 = vmatprep.mubr.bf16.mxu0 0
      %544 = vmatmul.mubr.bf16.gmra.mrb[0].mxu0 %v501
      %v545 = vpop.f32.mrb[0].mxu0
      %v546 = vadd.f32 %v474, %v545
      %v547 = vpop.f32.mrb[0].mxu0
      %v548 = vpop.f32.mrb[0].mxu0
      %v549 = vadd.f32 %v474, %v548
      %v550 = vpop.f32.mrb[0].mxu0
      %551 = vdwg.mxu0
      %v552 = vld [vmem:[%s4 + $0x20] sm:$0xf]
      %v553 = vld [vmem:[%s4 + $0x24] sm:$0xf]
      %v554 = vld [vmem:[%s4 + $0x28] sm:$0xf]
      %v555 = vld [vmem:[%s4 + $0x2c] sm:$0xf]
      %v556 = vld [vmem:[%s5 + $0x2] sm:$0x1]
      %v557 = vlaneseq
      %v558 = vshrl.u32 %v557, 7
      %v559 = vsub.s32 0, %v558
      %v560 = vrot.slane %v556, %v559
      %v565 = vunpack.c.l.b16 %v552
      %v566 = vunpack.c.l.b16 %v553
      %v567 = vunpack.c.l.b16 %v554
      %v568 = vunpack.c.l.b16 %v555
      %v569 = vpack.c.b16 %v566, %v565
      %v570 = vpack.c.b16 %v568, %v567
      %573 = vmatprep.subr.bf16.mxu0 0
      %574 = vmatpush1.bf16.msra.mxu0 %v569
      %575 = vmatprep.subr.bf16.mxu0 0
      %576 = vmatpush1.bf16.msra.mxu0 %v570
      %577 = vmatprep.subr.bf16.mxu0 0
      %578 = vmatpush1.bf16.msra.mxu0 0
      %579 = vmatprep.subr.bf16.mxu0 0
      %580 = vmatpush1.bf16.msra.mxu0 0
      %581 = vmatprep.subr.bf16.mxu0 0
      %582 = vmatpush1.bf16.msra.mxu0 0
      %583 = vmatprep.subr.bf16.mxu0 0
      %584 = vmatpush1.bf16.msra.mxu0 0
      %585 = vmatprep.subr.bf16.mxu0 0
      %586 = vmatpush1.bf16.msra.mxu0 0
      %587 = vmatprep.subr.bf16.mxu0 0
      %588 = vmatpush1.bf16.msra.mxu0 0
      %589 = vmatprep.subr.bf16.mxu0 0
      %590 = vmatpush1.bf16.msra.mxu0 0
      %591 = vmatprep.subr.bf16.mxu0 0
      %592 = vmatpush1.bf16.msra.mxu0 0
      %593 = vmatprep.subr.bf16.mxu0 0
      %594 = vmatpush1.bf16.msra.mxu0 0
      %595 = vmatprep.subr.bf16.mxu0 0
      %596 = vmatpush1.bf16.msra.mxu0 0
      %597 = vmatprep.subr.bf16.mxu0 0
      %598 = vmatpush1.bf16.msra.mxu0 0
      %599 = vmatprep.subr.bf16.mxu0 0
      %600 = vmatpush1.bf16.msra.mxu0 0
      %601 = vmatprep.subr.bf16.mxu0 0
      %602 = vmatpush1.bf16.msra.mxu0 0
      %603 = vmatprep.subr.bf16.mxu0 0
      %604 = vmatpush1.bf16.msra.mxu0 0
      %605 = vmatprep.mubr.bf16.mxu0 0
      %606 = vmatmul.mubr.bf16.gmra.mrb[0].mxu0 %v498
      %v607 = vpop.f32.mrb[0].mxu0
      %v608 = vadd.f32 %v560, %v607
      %v609 = vpop.f32.mrb[0].mxu0
      %v610 = vpop.f32.mrb[0].mxu0
      %v611 = vadd.f32 %v560, %v610
      %v612 = vpop.f32.mrb[0].mxu0
      %613 = vmatprep.mubr.bf16.mxu0 0
      %614 = vmatmul.mubr.bf16.gmra.mrb[0].mxu0 %v501
      %v615 = vpop.f32.mrb[0].mxu0
      %v616 = vadd.f32 %v560, %v615
      %v617 = vpop.f32.mrb[0].mxu0
      %v618 = vpop.f32.mrb[0].mxu0
      %v619 = vadd.f32 %v560, %v618
      %v620 = vpop.f32.mrb[0].mxu0
      %621 = vdwg.mxu0
      %v622 = vmul.f32 %v452, %v538
      %v623 = vmul.f32 %v455, %v541
      %v624 = vmul.f32 %v460, %v546
      %v625 = vmul.f32 %v463, %v549
      %v626 = vpack.c.bf16 %v623, %v622
      %v627 = vpack.c.bf16 %v625, %v624
      %v628 = vld [vmem:[%s4 + $0xb0] sm:$0xf]
      %v629 = vld [vmem:[%s4 + $0xb4] sm:$0xf]
      %v630 = vld [vmem:[%s4 + $0xb8] sm:$0xf]
      %v631 = vld [vmem:[%s4 + $0xbc] sm:$0xf]
      %v636 = vunpack.c.l.b16 %v628
      %v637 = vunpack.c.l.b16 %v629
      %v638 = vunpack.c.l.b16 %v630
      %v639 = vunpack.c.l.b16 %v631
      %v640 = vpack.c.b16 %v637, %v636
      %v641 = vpack.c.b16 %v639, %v638
      %v645 = vsel %vm410, %v626, 0
      %v648 = vsel %vm410, %v627, 0
      %650 = vmatprep.subr.bf16.mxu0 0
      %651 = vmatpush1.bf16.msra.mxu0 %v640
      %652 = vmatprep.subr.bf16.mxu0 0
      %653 = vmatpush1.bf16.msra.mxu0 %v641
      %654 = vmatprep.subr.bf16.mxu0 0
      %655 = vmatpush1.bf16.msra.mxu0 0
      %656 = vmatprep.subr.bf16.mxu0 0
      %657 = vmatpush1.bf16.msra.mxu0 0
      %658 = vmatprep.subr.bf16.mxu0 0
      %659 = vmatpush1.bf16.msra.mxu0 0
      %660 = vmatprep.subr.bf16.mxu0 0
      %661 = vmatpush1.bf16.msra.mxu0 0
      %662 = vmatprep.subr.bf16.mxu0 0
      %663 = vmatpush1.bf16.msra.mxu0 0
      %664 = vmatprep.subr.bf16.mxu0 0
      %665 = vmatpush1.bf16.msra.mxu0 0
      %666 = vmatprep.subr.bf16.mxu0 0
      %667 = vmatpush1.bf16.msra.mxu0 0
      %668 = vmatprep.subr.bf16.mxu0 0
      %669 = vmatpush1.bf16.msra.mxu0 0
      %670 = vmatprep.subr.bf16.mxu0 0
      %671 = vmatpush1.bf16.msra.mxu0 0
      %672 = vmatprep.subr.bf16.mxu0 0
      %673 = vmatpush1.bf16.msra.mxu0 0
      %674 = vmatprep.subr.bf16.mxu0 0
      %675 = vmatpush1.bf16.msra.mxu0 0
      %676 = vmatprep.subr.bf16.mxu0 0
      %677 = vmatpush1.bf16.msra.mxu0 0
      %678 = vmatprep.subr.bf16.mxu0 0
      %679 = vmatpush1.bf16.msra.mxu0 0
      %680 = vmatprep.subr.bf16.mxu0 0
      %681 = vmatpush1.bf16.msra.mxu0 0
      %682 = vmatprep.mubr.bf16.mxu0 0
      %683 = vmatmul.mubr.bf16.gmra.mrb[0].mxu0 %v645
      %v684 = vpop.f32.mrb[0].mxu0
      %v685 = vadd.f32 0.0, %v684
      %v686 = vpop.f32.mrb[0].mxu0
      %v687 = vpop.f32.mrb[0].mxu0
      %v688 = vadd.f32 0.0, %v687
      %v689 = vpop.f32.mrb[0].mxu0
      %690 = vmatprep.mubr.bf16.mxu0 0
      %691 = vmatmul.mubr.bf16.gmra.mrb[0].mxu0 %v648
      %v692 = vpop.f32.mrb[0].mxu0
      %v693 = vadd.f32 0.0, %v692
      %v694 = vpop.f32.mrb[0].mxu0
      %v695 = vpop.f32.mrb[0].mxu0
      %v696 = vadd.f32 0.0, %v695
      %v697 = vpop.f32.mrb[0].mxu0
      %698 = vdwg.mxu0
      %v699 = vsel %vm410, %v685, -inf
      %700 = vmax.xlane.f32.xlu0 %v699
      %v701 = vpop.xlane.xlu0 %700
      %v702 = vsel %vm410, %v688, -inf
      %703 = vmax.xlane.f32.xlu0 %v702
      %v704 = vpop.xlane.xlu0 %703
      %v705 = vsel %vm410, %v693, -inf
      %706 = vmax.xlane.f32.xlu0 %v705
      %v707 = vpop.xlane.xlu0 %706
      %v708 = vsel %vm410, %v696, -inf
      %709 = vmax.xlane.f32.xlu0 %v708
      %v710 = vpop.xlane.xlu0 %709
      %v711 = vsub.f32 %v685, %v701
      %v712 = vsub.f32 %v688, %v704
      %v713 = vsub.f32 %v693, %v707
      %v714 = vsub.f32 %v696, %v710
      %v715 = vmul.f32 %v711, 1.442695
      %v716 = vpow.pop %v715
      %v717 = vmul.f32 %v712, 1.442695
      %v718 = vpow.pop %v717
      %v719 = vmul.f32 %v713, 1.442695
      %v720 = vpow.pop %v719
      %v721 = vmul.f32 %v714, 1.442695
      %v722 = vpow.pop %v721
      %v723 = vsel %vm410, %v716, 0.0
      %724 = vadd.xlane.f32.xlu0 %v723
      %v725 = vpop.xlane.xlu0 %724
      %v726 = vsel %vm410, %v718, 0.0
      %727 = vadd.xlane.f32.xlu0 %v726
      %v728 = vpop.xlane.xlu0 %727
      %v729 = vsel %vm410, %v720, 0.0
      %730 = vadd.xlane.f32.xlu0 %v729
      %v731 = vpop.xlane.xlu0 %730
      %v732 = vsel %vm410, %v722, 0.0
      %733 = vadd.xlane.f32.xlu0 %v732
      %v734 = vpop.xlane.xlu0 %733
      %v735 = vrcp.pop %v725
      %v736 = vrcp.pop %v728
      %v737 = vrcp.pop %v731
      %v738 = vrcp.pop %v734
      %v739 = vmul.f32 %v735, 8.0
      %v740 = vmul.f32 %v736, 8.0
      %v741 = vmul.f32 %v737, 8.0
      %v742 = vmul.f32 %v738, 8.0
      %v743 = vmul.f32 %v716, %v739
      %v744 = vmul.f32 %v718, %v740
      %v745 = vmul.f32 %v720, %v741
      %v746 = vmul.f32 %v722, %v742
      %v747 = vmul.f32 %v743, %v608
      %v748 = vmul.f32 %v744, %v611
      %v749 = vmul.f32 %v745, %v616
      %v750 = vmul.f32 %v746, %v619
      %v755 = vunpack.c.l.b16 %v371
      %v756 = vunpack.c.l.b16 %v372
      %v757 = vunpack.c.l.b16 %v373
      %v758 = vunpack.c.l.b16 %v374
      %v759 = vpack.c.b16 %v756, %v755
      %v760 = vpack.c.b16 %v758, %v757
      %761 = vrot.lane.b32.xlu0 %v759, 32
      %v762 = vpop.permute.xlu0 %761
      %763 = vrot.lane.b32.xlu0 %v760, 32
      %v764 = vpop.permute.xlu0 %763
      %765 = vrot.lane.b32.xlu0 %v396, 64
      %v766 = vpop.permute.xlu0 %765
      %767 = vrot.lane.b32.xlu0 %v397, 64
      %v768 = vpop.permute.xlu0 %767
      %v770 = vsel %vm410, %v483, %v762
      %v772 = vsel %vm410, %v484, %v764
      %vm773 = vcmask 523264
      %v775 = vsel %vm773, %v770, %v766
      %v777 = vsel %vm773, %v772, %v768
      %v778 = vld [vmem:[%s4 + $0x30] sm:$0xf]
      %v779 = vld [vmem:[%s4 + $0x34] sm:$0xf]
      %v780 = vld [vmem:[%s4 + $0x38] sm:$0xf]
      %v781 = vld [vmem:[%s4 + $0x3c] sm:$0xf]
      %v782 = vld [vmem:[%s4 + $0x40] sm:$0xf]
      %v783 = vld [vmem:[%s4 + $0x44] sm:$0xf]
      %v784 = vld [vmem:[%s4 + $0x48] sm:$0xf]
      %v785 = vld [vmem:[%s4 + $0x4c] sm:$0xf]
      %v786 = vld [vmem:[%s4 + $0x50] sm:$0xf]
      %v787 = vld [vmem:[%s4 + $0x54] sm:$0xf]
      %v788 = vld [vmem:[%s4 + $0x58] sm:$0xf]
      %v789 = vld [vmem:[%s4 + $0x5c] sm:$0xf]
      %v790 = vld [vmem:[%s5 + $0x3] sm:$0x1]
      %v791 = vlaneseq
      %v792 = vshrl.u32 %v791, 7
      %v793 = vsub.s32 0, %v792
      %v794 = vrot.slane %v790, %v793
      %v807 = vunpack.c.l.b16 %v778
      %v808 = vunpack.c.l.b16 %v779
      %v809 = vunpack.c.l.b16 %v780
      %v810 = vunpack.c.l.b16 %v781
      %v811 = vunpack.c.l.b16 %v782
      %v812 = vunpack.c.l.b16 %v783
      %v813 = vunpack.c.l.b16 %v784
      %v814 = vunpack.c.l.b16 %v785
      %v815 = vunpack.c.l.b16 %v786
      %v816 = vunpack.c.l.b16 %v787
      %v817 = vunpack.c.l.b16 %v788
      %v818 = vunpack.c.l.b16 %v789
      %v819 = vpack.c.b16 %v808, %v807
      %v820 = vpack.c.b16 %v810, %v809
      %v821 = vpack.c.b16 %v812, %v811
      %v822 = vpack.c.b16 %v814, %v813
      %v823 = vpack.c.b16 %v816, %v815
      %v824 = vpack.c.b16 %v818, %v817
      %vm831 = vcmask 785408
      %v832 = vsel %vm831, %v775, 0
      %v834 = vsel %vm831, %v777, 0
      %836 = vmatprep.subr.bf16.mxu0 0
      %837 = vmatpush1.bf16.msra.mxu0 %v819
      %838 = vmatprep.subr.bf16.mxu0 0
      %839 = vmatpush1.bf16.msra.mxu0 %v820
      %840 = vmatprep.subr.bf16.mxu0 0
      %841 = vmatpush1.bf16.msra.mxu0 %v821
      %842 = vmatprep.subr.bf16.mxu0 0
      %843 = vmatpush1.bf16.msra.mxu0 %v822
      %844 = vmatprep.subr.bf16.mxu0 0
      %845 = vmatpush1.bf16.msra.mxu0 %v823
      %846 = vmatprep.subr.bf16.mxu0 0
      %847 = vmatpush1.bf16.msra.mxu0 %v824
      %848 = vmatprep.subr.bf16.mxu0 0
      %849 = vmatpush1.bf16.msra.mxu0 0
      %850 = vmatprep.subr.bf16.mxu0 0
      %851 = vmatpush1.bf16.msra.mxu0 0
      %852 = vmatprep.subr.bf16.mxu0 0
      %853 = vmatpush1.bf16.msra.mxu0 0
      %854 = vmatprep.subr.bf16.mxu0 0
      %855 = vmatpush1.bf16.msra.mxu0 0
      %856 = vmatprep.subr.bf16.mxu0 0
      %857 = vmatpush1.bf16.msra.mxu0 0
      %858 = vmatprep.subr.bf16.mxu0 0
      %859 = vmatpush1.bf16.msra.mxu0 0
      %860 = vmatprep.subr.bf16.mxu0 0
      %861 = vmatpush1.bf16.msra.mxu0 0
      %862 = vmatprep.subr.bf16.mxu0 0
      %863 = vmatpush1.bf16.msra.mxu0 0
      %864 = vmatprep.subr.bf16.mxu0 0
      %865 = vmatpush1.bf16.msra.mxu0 0
      %866 = vmatprep.subr.bf16.mxu0 0
      %867 = vmatpush1.bf16.msra.mxu0 0
      %868 = vmatprep.mubr.bf16.mxu0 0
      %869 = vmatmul.mubr.bf16.gmra.mrb[0].mxu0 %v832
      %v870 = vpop.f32.mrb[0].mxu0
      %v871 = vadd.f32 %v794, %v870
      %v872 = vpop.f32.mrb[0].mxu0
      %v873 = vpop.f32.mrb[0].mxu0
      %v874 = vadd.f32 %v794, %v873
      %v875 = vpop.f32.mrb[0].mxu0
      %876 = vmatprep.mubr.bf16.mxu0 0
      %877 = vmatmul.mubr.bf16.gmra.mrb[0].mxu0 %v834
      %v878 = vpop.f32.mrb[0].mxu0
      %v879 = vadd.f32 %v794, %v878
      %v880 = vpop.f32.mrb[0].mxu0
      %v881 = vpop.f32.mrb[0].mxu0
      %v882 = vadd.f32 %v794, %v881
      %v883 = vpop.f32.mrb[0].mxu0
      %884 = vdwg.mxu0
      %v885 = vld [vmem:[%s5 + $0x4] sm:$0x1]
      %v886 = vld [vmem:[%s5 + $0x5] sm:$0x1]
      %v887 = vsel %vm410, %v871, 0.0
      %888 = vadd.xlane.f32.xlu0 %v887
      %v889 = vpop.xlane.xlu0 %888
      %v890 = vsel %vm410, %v874, 0.0
      %891 = vadd.xlane.f32.xlu0 %v890
      %v892 = vpop.xlane.xlu0 %891
      %v893 = vsel %vm410, %v879, 0.0
      %894 = vadd.xlane.f32.xlu0 %v893
      %v895 = vpop.xlane.xlu0 %894
      %v896 = vsel %vm410, %v882, 0.0
      %897 = vadd.xlane.f32.xlu0 %v896
      %v898 = vpop.xlane.xlu0 %897
      %v899 = vrcp.pop 32.0
      %v900 = vmul.f32 %v889, %v899
      %v901 = vmul.f32 %v892, %v899
      %v902 = vmul.f32 %v895, %v899
      %v903 = vmul.f32 %v898, %v899
      %v904 = vsub.f32 %v871, %v900
      %v905 = vsub.f32 %v874, %v901
      %v906 = vsub.f32 %v879, %v902
      %v907 = vsub.f32 %v882, %v903
      %v908 = vmul.f32 %v904, %v904
      %v909 = vmul.f32 %v905, %v905
      %v910 = vmul.f32 %v906, %v906
      %v911 = vmul.f32 %v907, %v907
      %v912 = vsel %vm410, %v908, 0.0
      %913 = vadd.xlane.f32.xlu0 %v912
      %v914 = vpop.xlane.xlu0 %913
      %v915 = vsel %vm410, %v909, 0.0
      %916 = vadd.xlane.f32.xlu0 %v915
      %v917 = vpop.xlane.xlu0 %916
      %v918 = vsel %vm410, %v910, 0.0
      %919 = vadd.xlane.f32.xlu0 %v918
      %v920 = vpop.xlane.xlu0 %919
      %v921 = vsel %vm410, %v911, 0.0
      %922 = vadd.xlane.f32.xlu0 %v921
      %v923 = vpop.xlane.xlu0 %922
      %v924 = vmul.f32 %v914, %v899
      %v925 = vmul.f32 %v917, %v899
      %v926 = vmul.f32 %v920, %v899
      %v927 = vmul.f32 %v923, %v899
      %v928 = vadd.f32 %v924, 1e-05
      %v929 = vadd.f32 %v925, 1e-05
      %v930 = vadd.f32 %v926, 1e-05
      %v931 = vadd.f32 %v927, 1e-05
      %v932 = vrsqrt.pop %v928
      %v933 = vrsqrt.pop %v929
      %v934 = vrsqrt.pop %v930
      %v935 = vrsqrt.pop %v931
      %v936 = vmul.f32 %v904, %v932
      %v937 = vmul.f32 %v905, %v933
      %v938 = vmul.f32 %v906, %v934
      %v939 = vmul.f32 %v907, %v935
      %v940 = vlaneseq
      %v941 = vshrl.u32 %v940, 7
      %v942 = vsub.s32 0, %v941
      %v943 = vrot.slane %v885, %v942
      %v944 = vmul.f32 %v936, %v943
      %v945 = vmul.f32 %v937, %v943
      %v946 = vmul.f32 %v938, %v943
      %v947 = vmul.f32 %v939, %v943
      %v948 = vlaneseq
      %v949 = vshrl.u32 %v948, 7
      %v950 = vsub.s32 0, %v949
      %v951 = vrot.slane %v886, %v950
      %v952 = vadd.f32 %v944, %v951
      %v953 = vadd.f32 %v945, %v951
      %v954 = vadd.f32 %v946, %v951
      %v955 = vadd.f32 %v947, %v951
      %v956 = vmul.f32 %v952, %v952
      %v957 = vmul.f32 %v953, %v953
      %v958 = vmul.f32 %v954, %v954
      %v959 = vmul.f32 %v955, %v955
      %v960 = vmul.f32 %v952, %v956
      %v961 = vmul.f32 %v953, %v957
      %v962 = vmul.f32 %v954, %v958
      %v963 = vmul.f32 %v955, %v959
      %v964 = vmul.f32 %v960, 0.044715
      %v965 = vmul.f32 %v961, 0.044715
      %v966 = vmul.f32 %v962, 0.044715
      %v967 = vmul.f32 %v963, 0.044715
      %v968 = vadd.f32 %v952, %v964
      %v969 = vadd.f32 %v953, %v965
      %v970 = vadd.f32 %v954, %v966
      %v971 = vadd.f32 %v955, %v967
      %v972 = vmul.f32 %v968, 0.7978846
      %v973 = vmul.f32 %v969, 0.7978846
      %v974 = vmul.f32 %v970, 0.7978846
      %v975 = vmul.f32 %v971, 0.7978846
      %v976 = vtanh.pop %v972
      %v977 = vtanh.pop %v973
      %v978 = vtanh.pop %v974
      %v979 = vtanh.pop %v975
      %v980 = vadd.f32 %v976, 1.0
      %v981 = vadd.f32 %v977, 1.0
      %v982 = vadd.f32 %v978, 1.0
      %v983 = vadd.f32 %v979, 1.0
      %v984 = vmul.f32 %v980, 0.5
      %v985 = vmul.f32 %v981, 0.5
      %v986 = vmul.f32 %v982, 0.5
      %v987 = vmul.f32 %v983, 0.5
      %v988 = vmul.f32 %v952, %v984
      %v989 = vmul.f32 %v953, %v985
      %v990 = vmul.f32 %v954, %v986
      %v991 = vmul.f32 %v955, %v987
      %v992 = vunpack.c.l.bf16 %v371
      %v993 = vunpack.c.l.bf16 %v372
      %v994 = vunpack.c.l.bf16 %v373
      %v995 = vunpack.c.l.bf16 %v374
      %v996 = vpack.c.bf16 %v989, %v988
      %v997 = vpack.c.bf16 %v991, %v990
      %v998 = vld [vmem:[%s4 + $0x60] sm:$0xf]
      %v999 = vld [vmem:[%s4 + $0x64] sm:$0xf]
      %v1000 = vld [vmem:[%s4 + $0x68] sm:$0xf]
      %v1001 = vld [vmem:[%s4 + $0x6c] sm:$0xf]
      %v1006 = vunpack.c.l.b16 %v998
      %v1007 = vunpack.c.l.b16 %v999
      %v1008 = vunpack.c.l.b16 %v1000
      %v1009 = vunpack.c.l.b16 %v1001
      %v1010 = vpack.c.b16 %v1007, %v1006
      %v1011 = vpack.c.b16 %v1009, %v1008
      %v1015 = vsel %vm410, %v996, 0
      %v1018 = vsel %vm410, %v997, 0
      %1020 = vmatprep.subr.bf16.mxu0 0
      %1021 = vmatpush1.bf16.msra.mxu0 %v1010
      %1022 = vmatprep.subr.bf16.mxu0 0
      %1023 = vmatpush1.bf16.msra.mxu0 %v1011
      %1024 = vmatprep.subr.bf16.mxu0 0
      %1025 = vmatpush1.bf16.msra.mxu0 0
      %1026 = vmatprep.subr.bf16.mxu0 0
      %1027 = vmatpush1.bf16.msra.mxu0 0
      %1028 = vmatprep.subr.bf16.mxu0 0
      %1029 = vmatpush1.bf16.msra.mxu0 0
      %1030 = vmatprep.subr.bf16.mxu0 0
      %1031 = vmatpush1.bf16.msra.mxu0 0
      %1032 = vmatprep.subr.bf16.mxu0 0
      %1033 = vmatpush1.bf16.msra.mxu0 0
      %1034 = vmatprep.subr.bf16.mxu0 0
      %1035 = vmatpush1.bf16.msra.mxu0 0
      %1036 = vmatprep.subr.bf16.mxu0 0
      %1037 = vmatpush1.bf16.msra.mxu0 0
      %1038 = vmatprep.subr.bf16.mxu0 0
      %1039 = vmatpush1.bf16.msra.mxu0 0
      %1040 = vmatprep.subr.bf16.mxu0 0
      %1041 = vmatpush1.bf16.msra.mxu0 0
      %1042 = vmatprep.subr.bf16.mxu0 0
      %1043 = vmatpush1.bf16.msra.mxu0 0
      %1044 = vmatprep.subr.bf16.mxu0 0
      %1045 = vmatpush1.bf16.msra.mxu0 0
      %1046 = vmatprep.subr.bf16.mxu0 0
      %1047 = vmatpush1.bf16.msra.mxu0 0
      %1048 = vmatprep.subr.bf16.mxu0 0
      %1049 = vmatpush1.bf16.msra.mxu0 0
      %1050 = vmatprep.subr.bf16.mxu0 0
      %1051 = vmatpush1.bf16.msra.mxu0 0
      %1052 = vmatprep.mubr.bf16.mxu0 0
      %1053 = vmatmul.mubr.bf16.gmra.mrb[0].mxu0 %v1015
      %v1054 = vpop.f32.mrb[0].mxu0
      %v1055 = vadd.f32 0.0, %v1054
      %v1056 = vpop.f32.mrb[0].mxu0
      %v1057 = vpop.f32.mrb[0].mxu0
      %v1058 = vadd.f32 0.0, %v1057
      %v1059 = vpop.f32.mrb[0].mxu0
      %1060 = vmatprep.mubr.bf16.mxu0 0
      %1061 = vmatmul.mubr.bf16.gmra.mrb[0].mxu0 %v1018
      %v1062 = vpop.f32.mrb[0].mxu0
      %v1063 = vadd.f32 0.0, %v1062
      %v1064 = vpop.f32.mrb[0].mxu0
      %v1065 = vpop.f32.mrb[0].mxu0
      %v1066 = vadd.f32 0.0, %v1065
      %v1067 = vpop.f32.mrb[0].mxu0
      %1068 = vdwg.mxu0
      %v1069 = vadd.f32 %v992, %v1055
      %v1070 = vadd.f32 %v993, %v1058
      %v1071 = vadd.f32 %v994, %v1063
      %v1072 = vadd.f32 %v995, %v1066
      %v1073 = vld [vmem:[%s5 + $0x6] sm:$0x1]
      %v1074 = vlaneseq
      %v1075 = vshrl.u32 %v1074, 7
      %v1076 = vsub.s32 0, %v1075
      %v1077 = vrot.slane %v1073, %v1076
      %v1078 = vadd.f32 %v1069, %v1077
      %v1079 = vadd.f32 %v1070, %v1077
      %v1080 = vadd.f32 %v1071, %v1077
      %v1081 = vadd.f32 %v1072, %v1077
      %v1082 = vld [vmem:[%s5 + $0x7] sm:$0x1]
      %v1083 = vld [vmem:[%s5 + $0x8] sm:$0x1]
      %v1084 = vsel %vm410, %v1078, 0.0
      %1085 = vadd.xlane.f32.xlu0 %v1084
      %v1086 = vpop.xlane.xlu0 %1085
      %v1087 = vsel %vm410, %v1079, 0.0
      %1088 = vadd.xlane.f32.xlu0 %v1087
      %v1089 = vpop.xlane.xlu0 %1088
      %v1090 = vsel %vm410, %v1080, 0.0
      %1091 = vadd.xlane.f32.xlu0 %v1090
      %v1092 = vpop.xlane.xlu0 %1091
      %v1093 = vsel %vm410, %v1081, 0.0
      %1094 = vadd.xlane.f32.xlu0 %v1093
      %v1095 = vpop.xlane.xlu0 %1094
      %v1096 = vmul.f32 %v1086, %v899
      %v1097 = vmul.f32 %v1089, %v899
      %v1098 = vmul.f32 %v1092, %v899
      %v1099 = vmul.f32 %v1095, %v899
      %v1100 = vsub.f32 %v1078, %v1096
      %v1101 = vsub.f32 %v1079, %v1097
      %v1102 = vsub.f32 %v1080, %v1098
      %v1103 = vsub.f32 %v1081, %v1099
      %v1104 = vmul.f32 %v1100, %v1100
      %v1105 = vmul.f32 %v1101, %v1101
      %v1106 = vmul.f32 %v1102, %v1102
      %v1107 = vmul.f32 %v1103, %v1103
      %v1108 = vsel %vm410, %v1104, 0.0
      %1109 = vadd.xlane.f32.xlu0 %v1108
      %v1110 = vpop.xlane.xlu0 %1109
      %v1111 = vsel %vm410, %v1105, 0.0
      %1112 = vadd.xlane.f32.xlu0 %v1111
      %v1113 = vpop.xlane.xlu0 %1112
      %v1114 = vsel %vm410, %v1106, 0.0
      %1115 = vadd.xlane.f32.xlu0 %v1114
      %v1116 = vpop.xlane.xlu0 %1115
      %v1117 = vsel %vm410, %v1107, 0.0
      %1118 = vadd.xlane.f32.xlu0 %v1117
      %v1119 = vpop.xlane.xlu0 %1118
      %v1120 = vmul.f32 %v1110, %v899
      %v1121 = vmul.f32 %v1113, %v899
      %v1122 = vmul.f32 %v1116, %v899
      %v1123 = vmul.f32 %v1119, %v899
      %v1124 = vadd.f32 %v1120, 1e-05
      %v1125 = vadd.f32 %v1121, 1e-05
      %v1126 = vadd.f32 %v1122, 1e-05
      %v1127 = vadd.f32 %v1123, 1e-05
      %v1128 = vrsqrt.pop %v1124
      %v1129 = vrsqrt.pop %v1125
      %v1130 = vrsqrt.pop %v1126
      %v1131 = vrsqrt.pop %v1127
      %v1132 = vmul.f32 %v1100, %v1128
      %v1133 = vmul.f32 %v1101, %v1129
      %v1134 = vmul.f32 %v1102, %v1130
      %v1135 = vmul.f32 %v1103, %v1131
      %v1136 = vlaneseq
      %v1137 = vshrl.u32 %v1136, 7
      %v1138 = vsub.s32 0, %v1137
      %v1139 = vrot.slane %v1082, %v1138
      %v1140 = vmul.f32 %v1132, %v1139
      %v1141 = vmul.f32 %v1133, %v1139
      %v1142 = vmul.f32 %v1134, %v1139
      %v1143 = vmul.f32 %v1135, %v1139
      %v1144 = vlaneseq
      %v1145 = vshrl.u32 %v1144, 7
      %v1146 = vsub.s32 0, %v1145
      %v1147 = vrot.slane %v1083, %v1146
      %v1148 = vadd.f32 %v1140, %v1147
      %v1149 = vadd.f32 %v1141, %v1147
      %v1150 = vadd.f32 %v1142, %v1147
      %v1151 = vadd.f32 %v1143, %v1147
      %1152 = vst.msk [vmem:[%s354] sm:$0xff] %vm410, %v1148
      %1153 = vst.msk [vmem:[%s354 + $0x8] sm:$0xff] %vm410, %v1149
      %1154 = vst.msk [vmem:[%s354 + $0x10] sm:$0xff] %vm410, %v1150
      %1155 = vst.msk [vmem:[%s354 + $0x18] sm:$0xff] %vm410, %v1151
      %v1156 = vpack.c.bf16 %v748, %v747
      %v1157 = vpack.c.bf16 %v750, %v749
      %1158 = vrot.lane.b32.xlu0 %v396, 32
      %v1159 = vpop.permute.xlu0 %1158
      %1160 = vrot.lane.b32.xlu0 %v397, 32
      %v1161 = vpop.permute.xlu0 %1160
      %v1164 = vsel %vm410, %v1156, %v1159
      %v1167 = vsel %vm410, %v1157, %v1161
      %v1168 = vld [vmem:[%s4 + $0x70] sm:$0xf]
      %v1169 = vld [vmem:[%s4 + $0x74] sm:$0xf]
      %v1170 = vld [vmem:[%s4 + $0x78] sm:$0xf]
      %v1171 = vld [vmem:[%s4 + $0x7c] sm:$0xf]
      %v1172 = vld [vmem:[%s4 + $0x80] sm:$0xf]
      %v1173 = vld [vmem:[%s4 + $0x84] sm:$0xf]
      %v1174 = vld [vmem:[%s4 + $0x88] sm:$0xf]
      %v1175 = vld [vmem:[%s4 + $0x8c] sm:$0xf]
      %v1176 = vld [vmem:[%s5 + $0x9] sm:$0x1]
      %v1177 = vlaneseq
      %v1178 = vshrl.u32 %v1177, 7
      %v1179 = vsub.s32 0, %v1178
      %v1180 = vrot.slane %v1176, %v1179
      %v1189 = vunpack.c.l.b16 %v1168
      %v1190 = vunpack.c.l.b16 %v1169
      %v1191 = vunpack.c.l.b16 %v1170
      %v1192 = vunpack.c.l.b16 %v1171
      %v1193 = vunpack.c.l.b16 %v1172
      %v1194 = vunpack.c.l.b16 %v1173
      %v1195 = vunpack.c.l.b16 %v1174
      %v1196 = vunpack.c.l.b16 %v1175
      %v1197 = vpack.c.b16 %v1190, %v1189
      %v1198 = vpack.c.b16 %v1192, %v1191
      %v1199 = vpack.c.b16 %v1194, %v1193
      %v1200 = vpack.c.b16 %v1196, %v1195
      %v1205 = vsel %vm773, %v1164, 0
      %v1207 = vsel %vm773, %v1167, 0
      %1209 = vmatprep.subr.bf16.mxu0 0
      %1210 = vmatpush1.bf16.msra.mxu0 %v1197
      %1211 = vmatprep.subr.bf16.mxu0 0
      %1212 = vmatpush1.bf16.msra.mxu0 %v1198
      %1213 = vmatprep.subr.bf16.mxu0 0
      %1214 = vmatpush1.bf16.msra.mxu0 %v1199
      %1215 = vmatprep.subr.bf16.mxu0 0
      %1216 = vmatpush1.bf16.msra.mxu0 %v1200
      %1217 = vmatprep.subr.bf16.mxu0 0
      %1218 = vmatpush1.bf16.msra.mxu0 0
      %1219 = vmatprep.subr.bf16.mxu0 0
      %1220 = vmatpush1.bf16.msra.mxu0 0
      %1221 = vmatprep.subr.bf16.mxu0 0
      %1222 = vmatpush1.bf16.msra.mxu0 0
      %1223 = vmatprep.subr.bf16.mxu0 0
      %1224 = vmatpush1.bf16.msra.mxu0 0
      %1225 = vmatprep.subr.bf16.mxu0 0
      %1226 = vmatpush1.bf16.msra.mxu0 0
      %1227 = vmatprep.subr.bf16.mxu0 0
      %1228 = vmatpush1.bf16.msra.mxu0 0
      %1229 = vmatprep.subr.bf16.mxu0 0
      %1230 = vmatpush1.bf16.msra.mxu0 0
      %1231 = vmatprep.subr.bf16.mxu0 0
      %1232 = vmatpush1.bf16.msra.mxu0 0
      %1233 = vmatprep.subr.bf16.mxu0 0
      %1234 = vmatpush1.bf16.msra.mxu0 0
      %1235 = vmatprep.subr.bf16.mxu0 0
      %1236 = vmatpush1.bf16.msra.mxu0 0
      %1237 = vmatprep.subr.bf16.mxu0 0
      %1238 = vmatpush1.bf16.msra.mxu0 0
      %1239 = vmatprep.subr.bf16.mxu0 0
      %1240 = vmatpush1.bf16.msra.mxu0 0
      %1241 = vmatprep.mubr.bf16.mxu0 0
      %1242 = vmatmul.mubr.bf16.gmra.mrb[0].mxu0 %v1205
      %v1243 = vpop.f32.mrb[0].mxu0
      %v1244 = vadd.f32 %v1180, %v1243
      %v1245 = vpop.f32.mrb[0].mxu0
      %v1246 = vpop.f32.mrb[0].mxu0
      %v1247 = vadd.f32 %v1180, %v1246
      %v1248 = vpop.f32.mrb[0].mxu0
      %1249 = vmatprep.mubr.bf16.mxu0 0
      %1250 = vmatmul.mubr.bf16.gmra.mrb[0].mxu0 %v1207
      %v1251 = vpop.f32.mrb[0].mxu0
      %v1252 = vadd.f32 %v1180, %v1251
      %v1253 = vpop.f32.mrb[0].mxu0
      %v1254 = vpop.f32.mrb[0].mxu0
      %v1255 = vadd.f32 %v1180, %v1254
      %v1256 = vpop.f32.mrb[0].mxu0
      %1257 = vdwg.mxu0
      %v1258 = vld [vmem:[%s5 + $0xa] sm:$0x1]
      %v1259 = vld [vmem:[%s5 + $0xb] sm:$0x1]
      %v1260 = vsel %vm773, %v1244, 0.0
      %1261 = vadd.xlane.f32.xlu0 %v1260
      %v1262 = vpop.xlane.xlu0 %1261
      %v1263 = vsel %vm773, %v1247, 0.0
      %1264 = vadd.xlane.f32.xlu0 %v1263
      %v1265 = vpop.xlane.xlu0 %1264
      %v1266 = vsel %vm773, %v1252, 0.0
      %1267 = vadd.xlane.f32.xlu0 %v1266
      %v1268 = vpop.xlane.xlu0 %1267
      %v1269 = vsel %vm773, %v1255, 0.0
      %1270 = vadd.xlane.f32.xlu0 %v1269
      %v1271 = vpop.xlane.xlu0 %1270
      %v1272 = vrcp.pop 64.0
      %v1273 = vmul.f32 %v1262, %v1272
      %v1274 = vmul.f32 %v1265, %v1272
      %v1275 = vmul.f32 %v1268, %v1272
      %v1276 = vmul.f32 %v1271, %v1272
      %v1277 = vsub.f32 %v1244, %v1273
      %v1278 = vsub.f32 %v1247, %v1274
      %v1279 = vsub.f32 %v1252, %v1275
      %v1280 = vsub.f32 %v1255, %v1276
      %v1281 = vmul.f32 %v1277, %v1277
      %v1282 = vmul.f32 %v1278, %v1278
      %v1283 = vmul.f32 %v1279, %v1279
      %v1284 = vmul.f32 %v1280, %v1280
      %v1285 = vsel %vm773, %v1281, 0.0
      %1286 = vadd.xlane.f32.xlu0 %v1285
      %v1287 = vpop.xlane.xlu0 %1286
      %v1288 = vsel %vm773, %v1282, 0.0
      %1289 = vadd.xlane.f32.xlu0 %v1288
      %v1290 = vpop.xlane.xlu0 %1289
      %v1291 = vsel %vm773, %v1283, 0.0
      %1292 = vadd.xlane.f32.xlu0 %v1291
      %v1293 = vpop.xlane.xlu0 %1292
      %v1294 = vsel %vm773, %v1284, 0.0
      %1295 = vadd.xlane.f32.xlu0 %v1294
      %v1296 = vpop.xlane.xlu0 %1295
      %v1297 = vmul.f32 %v1287, %v1272
      %v1298 = vmul.f32 %v1290, %v1272
      %v1299 = vmul.f32 %v1293, %v1272
      %v1300 = vmul.f32 %v1296, %v1272
      %v1301 = vadd.f32 %v1297, 1e-05
      %v1302 = vadd.f32 %v1298, 1e-05
      %v1303 = vadd.f32 %v1299, 1e-05
      %v1304 = vadd.f32 %v1300, 1e-05
      %v1305 = vrsqrt.pop %v1301
      %v1306 = vrsqrt.pop %v1302
      %v1307 = vrsqrt.pop %v1303
      %v1308 = vrsqrt.pop %v1304
      %v1309 = vmul.f32 %v1277, %v1305
      %v1310 = vmul.f32 %v1278, %v1306
      %v1311 = vmul.f32 %v1279, %v1307
      %v1312 = vmul.f32 %v1280, %v1308
      %v1313 = vlaneseq
      %v1314 = vshrl.u32 %v1313, 7
      %v1315 = vsub.s32 0, %v1314
      %v1316 = vrot.slane %v1258, %v1315
      %v1317 = vmul.f32 %v1309, %v1316
      %v1318 = vmul.f32 %v1310, %v1316
      %v1319 = vmul.f32 %v1311, %v1316
      %v1320 = vmul.f32 %v1312, %v1316
      %v1321 = vlaneseq
      %v1322 = vshrl.u32 %v1321, 7
      %v1323 = vsub.s32 0, %v1322
      %v1324 = vrot.slane %v1259, %v1323
      %v1325 = vadd.f32 %v1317, %v1324
      %v1326 = vadd.f32 %v1318, %v1324
      %v1327 = vadd.f32 %v1319, %v1324
      %v1328 = vadd.f32 %v1320, %v1324
      %v1329 = vmul.f32 %v1325, %v1325
      %v1330 = vmul.f32 %v1326, %v1326
      %v1331 = vmul.f32 %v1327, %v1327
      %v1332 = vmul.f32 %v1328, %v1328
      %v1333 = vmul.f32 %v1325, %v1329
      %v1334 = vmul.f32 %v1326, %v1330
      %v1335 = vmul.f32 %v1327, %v1331
      %v1336 = vmul.f32 %v1328, %v1332
      %v1337 = vmul.f32 %v1333, 0.044715
      %v1338 = vmul.f32 %v1334, 0.044715
      %v1339 = vmul.f32 %v1335, 0.044715
      %v1340 = vmul.f32 %v1336, 0.044715
      %v1341 = vadd.f32 %v1325, %v1337
      %v1342 = vadd.f32 %v1326, %v1338
      %v1343 = vadd.f32 %v1327, %v1339
      %v1344 = vadd.f32 %v1328, %v1340
      %v1345 = vmul.f32 %v1341, 0.7978846
      %v1346 = vmul.f32 %v1342, 0.7978846
      %v1347 = vmul.f32 %v1343, 0.7978846
      %v1348 = vmul.f32 %v1344, 0.7978846
      %v1349 = vtanh.pop %v1345
      %v1350 = vtanh.pop %v1346
      %v1351 = vtanh.pop %v1347
      %v1352 = vtanh.pop %v1348
      %v1353 = vadd.f32 %v1349, 1.0
      %v1354 = vadd.f32 %v1350, 1.0
      %v1355 = vadd.f32 %v1351, 1.0
      %v1356 = vadd.f32 %v1352, 1.0
      %v1357 = vmul.f32 %v1353, 0.5
      %v1358 = vmul.f32 %v1354, 0.5
      %v1359 = vmul.f32 %v1355, 0.5
      %v1360 = vmul.f32 %v1356, 0.5
      %v1361 = vmul.f32 %v1325, %v1357
      %v1362 = vmul.f32 %v1326, %v1358
      %v1363 = vmul.f32 %v1327, %v1359
      %v1364 = vmul.f32 %v1328, %v1360
      %v1365 = vunpack.c.l.bf16 %v375
      %v1366 = vunpack.c.l.bf16 %v376
      %v1367 = vunpack.c.l.bf16 %v377
      %v1368 = vunpack.c.l.bf16 %v378
      %v1369 = vpack.c.bf16 %v1362, %v1361
      %v1370 = vpack.c.bf16 %v1364, %v1363
      %v1371 = vld [vmem:[%s4 + $0x90] sm:$0xf]
      %v1372 = vld [vmem:[%s4 + $0x94] sm:$0xf]
      %v1373 = vld [vmem:[%s4 + $0x98] sm:$0xf]
      %v1374 = vld [vmem:[%s4 + $0x9c] sm:$0xf]
      %v1375 = vld [vmem:[%s4 + $0xa0] sm:$0xf]
      %v1376 = vld [vmem:[%s4 + $0xa4] sm:$0xf]
      %v1377 = vld [vmem:[%s4 + $0xa8] sm:$0xf]
      %v1378 = vld [vmem:[%s4 + $0xac] sm:$0xf]
      %v1387 = vunpack.c.l.b16 %v1371
      %v1388 = vunpack.c.l.b16 %v1372
      %v1389 = vunpack.c.l.b16 %v1373
      %v1390 = vunpack.c.l.b16 %v1374
      %v1391 = vunpack.c.l.b16 %v1375
      %v1392 = vunpack.c.l.b16 %v1376
      %v1393 = vunpack.c.l.b16 %v1377
      %v1394 = vunpack.c.l.b16 %v1378
      %v1395 = vpack.c.b16 %v1388, %v1387
      %v1396 = vpack.c.b16 %v1390, %v1389
      %v1397 = vpack.c.b16 %v1392, %v1391
      %v1398 = vpack.c.b16 %v1394, %v1393
      %v1404 = vsel %vm773, %v1369, 0
      %v1407 = vsel %vm773, %v1370, 0
      %1409 = vmatprep.subr.bf16.mxu0 0
      %1410 = vmatpush1.bf16.msra.mxu0 %v1395
      %1411 = vmatprep.subr.bf16.mxu0 0
      %1412 = vmatpush1.bf16.msra.mxu0 %v1396
      %1413 = vmatprep.subr.bf16.mxu0 0
      %1414 = vmatpush1.bf16.msra.mxu0 %v1397
      %1415 = vmatprep.subr.bf16.mxu0 0
      %1416 = vmatpush1.bf16.msra.mxu0 %v1398
      %1417 = vmatprep.subr.bf16.mxu0 0
      %1418 = vmatpush1.bf16.msra.mxu0 0
      %1419 = vmatprep.subr.bf16.mxu0 0
      %1420 = vmatpush1.bf16.msra.mxu0 0
      %1421 = vmatprep.subr.bf16.mxu0 0
      %1422 = vmatpush1.bf16.msra.mxu0 0
      %1423 = vmatprep.subr.bf16.mxu0 0
      %1424 = vmatpush1.bf16.msra.mxu0 0
      %1425 = vmatprep.subr.bf16.mxu0 0
      %1426 = vmatpush1.bf16.msra.mxu0 0
      %1427 = vmatprep.subr.bf16.mxu0 0
      %1428 = vmatpush1.bf16.msra.mxu0 0
      %1429 = vmatprep.subr.bf16.mxu0 0
      %1430 = vmatpush1.bf16.msra.mxu0 0
      %1431 = vmatprep.subr.bf16.mxu0 0
      %1432 = vmatpush1.bf16.msra.mxu0 0
      %1433 = vmatprep.subr.bf16.mxu0 0
      %1434 = vmatpush1.bf16.msra.mxu0 0
      %1435 = vmatprep.subr.bf16.mxu0 0
      %1436 = vmatpush1.bf16.msra.mxu0 0
      %1437 = vmatprep.subr.bf16.mxu0 0
      %1438 = vmatpush1.bf16.msra.mxu0 0
      %1439 = vmatprep.subr.bf16.mxu0 0
      %1440 = vmatpush1.bf16.msra.mxu0 0
      %1441 = vmatprep.mubr.bf16.mxu0 0
      %1442 = vmatmul.mubr.bf16.gmra.mrb[0].mxu0 %v1404
      %v1443 = vpop.f32.mrb[0].mxu0
      %v1444 = vadd.f32 0.0, %v1443
      %v1445 = vpop.f32.mrb[0].mxu0
      %v1446 = vpop.f32.mrb[0].mxu0
      %v1447 = vadd.f32 0.0, %v1446
      %v1448 = vpop.f32.mrb[0].mxu0
      %1449 = vmatprep.mubr.bf16.mxu0 0
      %1450 = vmatmul.mubr.bf16.gmra.mrb[0].mxu0 %v1407
      %v1451 = vpop.f32.mrb[0].mxu0
      %v1452 = vadd.f32 0.0, %v1451
      %v1453 = vpop.f32.mrb[0].mxu0
      %v1454 = vpop.f32.mrb[0].mxu0
      %v1455 = vadd.f32 0.0, %v1454
      %v1456 = vpop.f32.mrb[0].mxu0
      %1457 = vdwg.mxu0
      %v1458 = vadd.f32 %v1365, %v1444
      %v1459 = vadd.f32 %v1366, %v1447
      %v1460 = vadd.f32 %v1367, %v1452
      %v1461 = vadd.f32 %v1368, %v1455
      %v1462 = vld [vmem:[%s5 + $0xc] sm:$0x1]
      %v1463 = vlaneseq
      %v1464 = vshrl.u32 %v1463, 7
      %v1465 = vsub.s32 0, %v1464
      %v1466 = vrot.slane %v1462, %v1465
      %v1467 = vadd.f32 %v1458, %v1466
      %v1468 = vadd.f32 %v1459, %v1466
      %v1469 = vadd.f32 %v1460, %v1466
      %v1470 = vadd.f32 %v1461, %v1466
      %v1471 = vld [vmem:[%s5 + $0xd] sm:$0x1]
      %v1472 = vld [vmem:[%s5 + $0xe] sm:$0x1]
      %v1473 = vsel %vm410, %v1467, 0.0
      %1474 = vadd.xlane.f32.xlu0 %v1473
      %v1475 = vpop.xlane.xlu0 %1474
      %v1476 = vsel %vm410, %v1468, 0.0
      %1477 = vadd.xlane.f32.xlu0 %v1476
      %v1478 = vpop.xlane.xlu0 %1477
      %v1479 = vsel %vm410, %v1469, 0.0
      %1480 = vadd.xlane.f32.xlu0 %v1479
      %v1481 = vpop.xlane.xlu0 %1480
      %v1482 = vsel %vm410, %v1470, 0.0
      %1483 = vadd.xlane.f32.xlu0 %v1482
      %v1484 = vpop.xlane.xlu0 %1483
      %v1485 = vmul.f32 %v1475, %v899
      %v1486 = vmul.f32 %v1478, %v899
      %v1487 = vmul.f32 %v1481, %v899
      %v1488 = vmul.f32 %v1484, %v899
      %v1489 = vsub.f32 %v1467, %v1485
      %v1490 = vsub.f32 %v1468, %v1486
      %v1491 = vsub.f32 %v1469, %v1487
      %v1492 = vsub.f32 %v1470, %v1488
      %v1493 = vmul.f32 %v1489, %v1489
      %v1494 = vmul.f32 %v1490, %v1490
      %v1495 = vmul.f32 %v1491, %v1491
      %v1496 = vmul.f32 %v1492, %v1492
      %v1497 = vsel %vm410, %v1493, 0.0
      %1498 = vadd.xlane.f32.xlu0 %v1497
      %v1499 = vpop.xlane.xlu0 %1498
      %v1500 = vsel %vm410, %v1494, 0.0
      %1501 = vadd.xlane.f32.xlu0 %v1500
      %v1502 = vpop.xlane.xlu0 %1501
      %v1503 = vsel %vm410, %v1495, 0.0
      %1504 = vadd.xlane.f32.xlu0 %v1503
      %v1505 = vpop.xlane.xlu0 %1504
      %v1506 = vsel %vm410, %v1496, 0.0
      %1507 = vadd.xlane.f32.xlu0 %v1506
      %v1508 = vpop.xlane.xlu0 %1507
      %v1509 = vmul.f32 %v1499, %v899
      %v1510 = vmul.f32 %v1502, %v899
      %v1511 = vmul.f32 %v1505, %v899
      %v1512 = vmul.f32 %v1508, %v899
      %v1513 = vadd.f32 %v1509, 1e-05
      %v1514 = vadd.f32 %v1510, 1e-05
      %v1515 = vadd.f32 %v1511, 1e-05
      %v1516 = vadd.f32 %v1512, 1e-05
      %v1517 = vrsqrt.pop %v1513
      %v1518 = vrsqrt.pop %v1514
      %v1519 = vrsqrt.pop %v1515
      %v1520 = vrsqrt.pop %v1516
      %v1521 = vmul.f32 %v1489, %v1517
      %v1522 = vmul.f32 %v1490, %v1518
      %v1523 = vmul.f32 %v1491, %v1519
      %v1524 = vmul.f32 %v1492, %v1520
      %v1525 = vlaneseq
      %v1526 = vshrl.u32 %v1525, 7
      %v1527 = vsub.s32 0, %v1526
      %v1528 = vrot.slane %v1471, %v1527
      %v1529 = vmul.f32 %v1521, %v1528
      %v1530 = vmul.f32 %v1522, %v1528
      %v1531 = vmul.f32 %v1523, %v1528
      %v1532 = vmul.f32 %v1524, %v1528
      %v1533 = vlaneseq
      %v1534 = vshrl.u32 %v1533, 7
      %v1535 = vsub.s32 0, %v1534
      %v1536 = vrot.slane %v1472, %v1535
      %v1537 = vadd.f32 %v1529, %v1536
      %v1538 = vadd.f32 %v1530, %v1536
      %v1539 = vadd.f32 %v1531, %v1536
      %v1540 = vadd.f32 %v1532, %v1536
      %1541 = vst.msk [vmem:[%s360] sm:$0xff] %vm410, %v1537
      %1542 = vst.msk [vmem:[%s360 + $0x8] sm:$0xff] %vm410, %v1538
      %1543 = vst.msk [vmem:[%s360 + $0x10] sm:$0xff] %vm410, %v1539
      %1544 = vst.msk [vmem:[%s360 + $0x18] sm:$0xff] %vm410, %v1540
      %s1545 = smul.u32 4, %s19
      %p1546 = scmp.lt.s32.totalorder %s1545, 7
      %s1547 = scalar_select %p1546, %s1545, 7
      %s1548 = smul.addr %s1547, 8
      %s1549 = scalar_lea.vmem %s6, %s1548
      %s1550 = smul.u32 4, %s19
      %p1551 = scmp.lt.s32.totalorder %s1550, 7
      %s1552 = scalar_select %p1551, %s1550, 7
      %s1553 = smul.addr %s1552, 8
      %s1554 = scalar_lea.vmem %s7, %s1553
      // Predicated region
      $region45: #{tpu_custom_call.1} parent=43 // pred_check
        %p1555 = pneg %p183
      $region46: #{tpu_custom_call.1} parent=43 // pred_check_branch
        %1557 = sbr.rel (%p1555) target = $region48
      $region47: #{tpu_custom_call.1} parent=43 // pred_region
        %s1558 = smul.u32 4, %s19
      $region48: #{tpu_custom_call.1} parent=43 // pred_fallthru
        _
      // Predicated region
      $region49: #{tpu_custom_call.1} parent=43 // pred_check
        %p1559 = pneg %p209
      $region50: #{tpu_custom_call.1} parent=43 // pred_check_branch
        %1561 = sbr.rel (%p1559) target = $region52
      $region51: #{tpu_custom_call.1} parent=43 // pred_region
        %s1562 = smul.u32 4, %s19
      $region52: #{tpu_custom_call.1} parent=43 // pred_fallthru
        _
    $region44: #{tpu_custom_call.1} parent=5 // pred_fallthru
      _
    %p1563 = scmp.le.s32.totalorder 2, %s14
    // Predicated region
    $region53: #{tpu_custom_call.1} parent=5 // pred_check
      %p1564 = pneg %p1563
    $region54: #{tpu_custom_call.1} parent=5 // pred_check_branch
      %1566 = sbr.rel (%p1564) target = $region56
    $region55: #{tpu_custom_call.1} parent=5 // pred_region
      %s1567 = ssub.s32 %s14, 2
      // Predicated region
      $region57: #{tpu_custom_call.1} parent=55 // pred_check
        %p1568 = pneg %p189
      $region58: #{tpu_custom_call.1} parent=55 // pred_check_branch
        %1570 = sbr.rel (%p1568) target = $region60
      $region59: #{tpu_custom_call.1} parent=55 // pred_region
        %s1571 = smul.u32 4, %s20
        %p1572 = scmp.lt.s32.totalorder %s1571, 7
        %s1573 = scalar_select %p1572, %s1571, 7
        %s1574 = smul.addr %s1573, 8
        %s1575 = scalar_lea.vmem %s6, %s1574
      $region60: #{tpu_custom_call.1} parent=55 // pred_fallthru
        _
      // Predicated region
      $region61: #{tpu_custom_call.1} parent=55 // pred_check
        %p1576 = pneg %p215
      $region62: #{tpu_custom_call.1} parent=55 // pred_check_branch
        %1578 = sbr.rel (%p1576) target = $region64
      $region63: #{tpu_custom_call.1} parent=55 // pred_region
        %s1579 = smul.u32 4, %s20
        %p1580 = scmp.lt.s32.totalorder %s1579, 7
        %s1581 = scalar_select %p1580, %s1579, 7
        %s1582 = smul.addr %s1581, 8
        %s1583 = scalar_lea.vmem %s7, %s1582
      $region64: #{tpu_custom_call.1} parent=55 // pred_fallthru
        _
    $region56: #{tpu_custom_call.1} parent=5 // pred_fallthru
      _
  $region6: #{tpu_custom_call.1} parent=0 // loop_footer
    %s18 = sadd.s32 1, %s14
  $region7: #{tpu_custom_call.1} parent=0 // loop_footer_branch
    %13 = sbr.rel target = $region3
  $region8: #{tpu_custom_call.1} parent=0 // loop_exit
    _

</llo_original>
